<compile_context>
chip_gen: v7x
topology: tpu7x:2x2x1
jax: 0.10.0
libtpu: 0.0.40
codegen_flags: <defaults>
</compile_context>

<pallas_src>
import jax
import jax.numpy as jnp
from jax.experimental import pallas as pl
from jax.experimental.pallas import tpu as pltpu

KSIZE = 5  # both convs are 5x5


# ----------------------------------------------------------------------------
# Pallas kernels
# ----------------------------------------------------------------------------
def _conv_relu_pool_kernel(p_ref, w_ref, b_ref, o_ref):
    """Fused conv-as-matmul + bias + ReLU + 2x2 max-pool.

    p_ref: (4, K, TM)  im2col patches, one (K, TM) slab per pool-window quadrant
    w_ref: (OutC, K)   conv weight, K ordered (kh, kw, c)
    b_ref: (OutC, 1)
    o_ref: (OutC, TM)  pooled output; spatial (n, hp, wp) on the lane axis
    """
    w = w_ref[...]
    b = b_ref[...]

    def quad(q):
        y = jnp.dot(w, p_ref[q], preferred_element_type=jnp.float32) + b
        return jnp.maximum(y, 0.0)  # ReLU per quadrant (max∘relu == relu∘max)

    y = jnp.maximum(jnp.maximum(quad(0), quad(1)), jnp.maximum(quad(2), quad(3)))
    o_ref[...] = y.astype(o_ref.dtype)


def _fc_stack_kernel(x_ref, w1_ref, b1_ref, w2_ref, b2_ref, w3_ref, b3_ref, o_ref):
    """fc1+ReLU -> fc2+ReLU -> fc3 in one kernel; intermediates stay on-chip.
    Weight/bias lane dims are pre-padded to 128 -> no masked partial stores."""
    h = jnp.dot(x_ref[...], w1_ref[...], preferred_element_type=jnp.float32) + b1_ref[...]
    h = jnp.maximum(h, 0.0)
    h = jnp.dot(h, w2_ref[...], preferred_element_type=jnp.float32) + b2_ref[...]
    h = jnp.maximum(h, 0.0)
    o_ref[...] = (
        jnp.dot(h, w3_ref[...], preferred_element_type=jnp.float32) + b3_ref[...]
    ).astype(o_ref.dtype)


# ----------------------------------------------------------------------------
# Glue: quadrant-ordered im2col (built directly in (4, K, M) layout)
# ----------------------------------------------------------------------------
def _quadrant_patches(x_cnhw, k):
    """x: (C, N, H, W) -> (4, C*k*k, N*Hp*Wp); K ordered (kh, kw, c) fastest=c."""
    C, N, H, W = x_cnhw.shape
    Ho, Wo = H - k + 1, W - k + 1
    Hp, Wp = Ho // 2, Wo // 2
    Mq = N * Hp * Wp
    quads = []
    for dh in range(2):
        for dw in range(2):
            rows = []
            for kh in range(k):
                for kw in range(k):
                    h0, w0 = dh + kh, dw + kw
                    sl = x_cnhw[:, :, h0 : h0 + 2 * Hp : 2, w0 : w0 + 2 * Wp : 2]
                    rows.append(sl.reshape(C, Mq))          # (C, Mq)
                # row index = (kh*k + kw)*C + c  -> matches prepared weight layout
            quads.append(jnp.concatenate(rows, axis=0))     # (K, Mq)
    return jnp.stack(quads, axis=0), Hp, Wp                 # (4, K, Mq)


# ----------------------------------------------------------------------------
# Pallas-call wrappers
# ----------------------------------------------------------------------------
def conv_relu_pool(x_cnhw, w2d, b2d):
    """x: (C, N, H, W), w2d: (OutC, C*k*k), b2d: (OutC, 1) -> (OutC, N, Hp, Wp)."""
    C, N, H, W = x_cnhw.shape
    out_c, K = w2d.shape
    patches, Hp, Wp = _quadrant_patches(x_cnhw, KSIZE)
    Mq = N * Hp * Wp
    TM = Mq if Mq <= 512 else 512  # lane-dense spatial tile; bounds VMEM on v7x

    y = pl.pallas_call(
        _conv_relu_pool_kernel,
        out_shape=jax.ShapeDtypeStruct((out_c, Mq), jnp.float32),
        grid_spec=pltpu.PrefetchScalarGridSpec(
            num_scalar_prefetch=0,
            grid=(pl.cdiv(Mq, TM),),
            in_specs=[
                pl.BlockSpec((4, K, TM), lambda i: (0, 0, i)),
                pl.BlockSpec((out_c, K), lambda i: (0, 0)),
                pl.BlockSpec((out_c, 1), lambda i: (0, 0)),
            ],
            out_specs=pl.BlockSpec((out_c, TM), lambda i: (0, i)),
        ),
        compiler_params=pltpu.CompilerParams(dimension_semantics=("parallel",)),
    )(patches, w2d, b2d)
    return y.reshape(out_c, N, Hp, Wp)  # already (C, N, H, W) for the next layer


def fc_stack(h, w1, b1, w2, b2, w3, b3, n_out):
    """h: (N, 400) -> logits (N, n_out) via a single fused 3-layer FC kernel."""
    N, D = h.shape
    P = w1.shape[1]                      # padded lane width (128)
    TB = N if N <= 256 else 256

    out = pl.pallas_call(
        _fc_stack_kernel,
        out_shape=jax.ShapeDtypeStruct((N, P), jnp.float32),
        grid_spec=pltpu.PrefetchScalarGridSpec(
            num_scalar_prefetch=0,
            grid=(pl.cdiv(N, TB),),
            in_specs=[
                pl.BlockSpec((TB, D), lambda i: (i, 0)),
                pl.BlockSpec((D, P), lambda i: (0, 0)),
                pl.BlockSpec((1, P), lambda i: (0, 0)),
                pl.BlockSpec((P, P), lambda i: (0, 0)),
                pl.BlockSpec((1, P), lambda i: (0, 0)),
                pl.BlockSpec((P, P), lambda i: (0, 0)),
                pl.BlockSpec((1, P), lambda i: (0, 0)),
            ],
            out_specs=pl.BlockSpec((TB, P), lambda i: (i, 0)),
        ),
        compiler_params=pltpu.CompilerParams(dimension_semantics=("parallel",)),
    )(h, w1, b1, w2, b2, w3, b3)
    return out[:, :n_out]


# ----------------------------------------------------------------------------
# Parameters (torch-like uniform fan-in init) + one-time layout prep
# ----------------------------------------------------------------------------
def init_params(key):
    def u(key, shape, fan_in):
        bound = 1.0 / jnp.sqrt(jnp.float32(fan_in))
        return jax.random.uniform(key, shape, jnp.float32, -bound, bound)

    ks = jax.random.split(key, 10)
    return {
        "conv1_w": u(ks[0], (6, 3, 5, 5), 3 * 25),
        "conv1_b": u(ks[1], (6,), 3 * 25),
        "conv2_w": u(ks[2], (16, 6, 5, 5), 6 * 25),
        "conv2_b": u(ks[3], (16,), 6 * 25),
        "fc1_w": u(ks[4], (120, 400), 400),   # torch Linear: (out, in)
        "fc1_b": u(ks[5], (120,), 400),
        "fc2_w": u(ks[6], (84, 120), 120),
        "fc2_b": u(ks[7], (84,), 120),
        "fc3_w": u(ks[8], (10, 84), 84),
        "fc3_b": u(ks[9], (10,), 84),
    }


def prepare_params(p):
    """One-time weight layout prep (NOT per forward pass):
      * conv weights -> (OutC, k*k*C) with K ordered (kh, kw, c) to match patches
      * fc weights   -> transposed to (in, out) and zero-padded to 128 lanes
    """
    def conv_prep(w):
        o, c, kh, kw = w.shape
        return w.transpose(0, 2, 3, 1).reshape(o, kh * kw * c)

    def pad2d(a, rows, cols):
        out = jnp.zeros((rows, cols), jnp.float32)
        return out.at[: a.shape[0], : a.shape[1]].set(a)

    return {
        "c1_w": conv_prep(p["conv1_w"]),                 # (6, 75)
        "c1_b": p["conv1_b"].reshape(-1, 1),             # (6, 1)
        "c2_w": conv_prep(p["conv2_w"]),                 # (16, 400)
        "c2_b": p["conv2_b"].reshape(-1, 1),             # (16, 1)
        "fc1_w": pad2d(p["fc1_w"].T, 400, 128),
        "fc1_b": pad2d(p["fc1_b"].reshape(1, -1), 1, 128),
        "fc2_w": pad2d(p["fc2_w"].T, 128, 128),
        "fc2_b": pad2d(p["fc2_b"].reshape(1, -1), 1, 128),
        "fc3_w": pad2d(p["fc3_w"].T, 128, 128),
        "fc3_b": pad2d(p["fc3_b"].reshape(1, -1), 1, 128),
    }


# ----------------------------------------------------------------------------
# Full forward pass (matches torch: pool(relu(conv1)), pool(relu(conv2)),
# flatten(C,H,W), relu(fc1), relu(fc2), fc3)
# ----------------------------------------------------------------------------
@jax.jit
def net_forward(x, pp):
    n = x.shape[0]
    x = jnp.transpose(x, (1, 0, 2, 3))                     # (3, N, 32, 32) — once, un-inflated
    x = conv_relu_pool(x, pp["c1_w"], pp["c1_b"])          # (6, N, 14, 14)
    x = conv_relu_pool(x, pp["c2_w"], pp["c2_b"])          # (16, N, 5, 5)
    # flatten in torch's (C, H, W) order -> (N, 400); tiny glue copy (~1.6 KB/sample)
    h = jnp.transpose(x, (1, 0, 2, 3)).reshape(n, 16 * 5 * 5)
    return fc_stack(h, pp["fc1_w"], pp["fc1_b"], pp["fc2_w"], pp["fc2_b"],
                    pp["fc3_w"], pp["fc3_b"], n_out=10)


if __name__ == "__main__":
    key = jax.random.PRNGKey(0)
    k_in, k_par = jax.random.split(key)
    x = jax.random.normal(k_in, (2, 3, 32, 32), jnp.float32)  # NCHW, CIFAR-size
    params = init_params(k_par)
    prepped = prepare_params(params)                          # one-time layout prep

    logits = net_forward(x, prepped)
    jax.block_until_ready(logits)
    assert logits.shape == (2, 10) and logits.dtype == jnp.float32
    print("KERNEL_OK")
</pallas_src>

<mosaic_0001>
module attributes {stable_mosaic.version = 11 : i64} {
  func.func @_conv_relu_pool_kernel(%arg0: i32, %arg1: memref<4x75x392xf32, #tpu.memory_space<vmem>>, %arg2: memref<6x75xf32, #tpu.memory_space<vmem>>, %arg3: memref<6x1xf32, #tpu.memory_space<vmem>>, %arg4: memref<6x392xf32, #tpu.memory_space<vmem>>) attributes {dimension_semantics = [#tpu.dimension_semantics<parallel>], iteration_bounds = array<i64: 1>, scalar_prefetch = 0 : i64, scratch_operands = 0 : i64, tpu.core_type = #tpu.core_type<tc>, window_params = [{transform_indices = @transform_0, window_bounds = array<i64: 4, 75, 392>}, {pipeline_mode = #tpu.pipeline_mode<synchronous>, transform_indices = @transform_1, window_bounds = array<i64: 6, 75>}, {pipeline_mode = #tpu.pipeline_mode<synchronous>, transform_indices = @transform_2, window_bounds = array<i64: 6, 1>}, {transform_indices = @transform_3, window_bounds = array<i64: 6, 392>}]} {
    %c0 = arith.constant 0 : index
    %c0_0 = arith.constant 0 : index
    %0 = vector.load %arg2[%c0, %c0_0] : memref<6x75xf32, #tpu.memory_space<vmem>>, vector<6x75xf32>
    %c0_1 = arith.constant 0 : index
    %c0_2 = arith.constant 0 : index
    %1 = vector.load %arg3[%c0_1, %c0_2] : memref<6x1xf32, #tpu.memory_space<vmem>>, vector<6x1xf32>
    %c0_3 = arith.constant 0 : index
    %c0_4 = arith.constant 0 : index
    %c0_5 = arith.constant 0 : index
    %2 = vector.load %arg1[%c0_3, %c0_4, %c0_5] : memref<4x75x392xf32, #tpu.memory_space<vmem>>, vector<1x75x392xf32>
    %3 = vector.shape_cast %2 : vector<1x75x392xf32> to vector<75x392xf32>
    %cst = arith.constant dense<0.000000e+00> : vector<6x392xf32>
    %4 = tpu.matmul %0, %3, %cst {dimension_numbers = #tpu.dot_dimension_numbers<[1], [0], [0], [1], [0, 0, 1, 1], [], []>} : vector<6x75xf32>, vector<75x392xf32>, vector<6x392xf32> -> vector<6x392xf32>
    %5 = vector.broadcast %1 : vector<6x1xf32> to vector<6x392xf32>
    %6 = arith.addf %4, %5 : vector<6x392xf32>
    %cst_6 = arith.constant 0.000000e+00 : f32
    %7 = vector.broadcast %cst_6 : f32 to vector<6x392xf32>
    %8 = arith.maximumf %6, %7 : vector<6x392xf32>
    %c1 = arith.constant 1 : index
    %c0_7 = arith.constant 0 : index
    %c0_8 = arith.constant 0 : index
    %9 = vector.load %arg1[%c1, %c0_7, %c0_8] : memref<4x75x392xf32, #tpu.memory_space<vmem>>, vector<1x75x392xf32>
    %10 = vector.shape_cast %9 : vector<1x75x392xf32> to vector<75x392xf32>
    %cst_9 = arith.constant dense<0.000000e+00> : vector<6x392xf32>
    %11 = tpu.matmul %0, %10, %cst_9 {dimension_numbers = #tpu.dot_dimension_numbers<[1], [0], [0], [1], [0, 0, 1, 1], [], []>} : vector<6x75xf32>, vector<75x392xf32>, vector<6x392xf32> -> vector<6x392xf32>
    %12 = vector.broadcast %1 : vector<6x1xf32> to vector<6x392xf32>
    %13 = arith.addf %11, %12 : vector<6x392xf32>
    %cst_10 = arith.constant 0.000000e+00 : f32
    %14 = vector.broadcast %cst_10 : f32 to vector<6x392xf32>
    %15 = arith.maximumf %13, %14 : vector<6x392xf32>
    %16 = arith.maximumf %8, %15 : vector<6x392xf32>
    %c2 = arith.constant 2 : index
    %c0_11 = arith.constant 0 : index
    %c0_12 = arith.constant 0 : index
    %17 = vector.load %arg1[%c2, %c0_11, %c0_12] : memref<4x75x392xf32, #tpu.memory_space<vmem>>, vector<1x75x392xf32>
    %18 = vector.shape_cast %17 : vector<1x75x392xf32> to vector<75x392xf32>
    %cst_13 = arith.constant dense<0.000000e+00> : vector<6x392xf32>
    %19 = tpu.matmul %0, %18, %cst_13 {dimension_numbers = #tpu.dot_dimension_numbers<[1], [0], [0], [1], [0, 0, 1, 1], [], []>} : vector<6x75xf32>, vector<75x392xf32>, vector<6x392xf32> -> vector<6x392xf32>
    %20 = vector.broadcast %1 : vector<6x1xf32> to vector<6x392xf32>
    %21 = arith.addf %19, %20 : vector<6x392xf32>
    %cst_14 = arith.constant 0.000000e+00 : f32
    %22 = vector.broadcast %cst_14 : f32 to vector<6x392xf32>
    %23 = arith.maximumf %21, %22 : vector<6x392xf32>
    %c3 = arith.constant 3 : index
    %c0_15 = arith.constant 0 : index
    %c0_16 = arith.constant 0 : index
    %24 = vector.load %arg1[%c3, %c0_15, %c0_16] : memref<4x75x392xf32, #tpu.memory_space<vmem>>, vector<1x75x392xf32>
    %25 = vector.shape_cast %24 : vector<1x75x392xf32> to vector<75x392xf32>
    %cst_17 = arith.constant dense<0.000000e+00> : vector<6x392xf32>
    %26 = tpu.matmul %0, %25, %cst_17 {dimension_numbers = #tpu.dot_dimension_numbers<[1], [0], [0], [1], [0, 0, 1, 1], [], []>} : vector<6x75xf32>, vector<75x392xf32>, vector<6x392xf32> -> vector<6x392xf32>
    %27 = vector.broadcast %1 : vector<6x1xf32> to vector<6x392xf32>
    %28 = arith.addf %26, %27 : vector<6x392xf32>
    %cst_18 = arith.constant 0.000000e+00 : f32
    %29 = vector.broadcast %cst_18 : f32 to vector<6x392xf32>
    %30 = arith.maximumf %28, %29 : vector<6x392xf32>
    %31 = arith.maximumf %23, %30 : vector<6x392xf32>
    %32 = arith.maximumf %16, %31 : vector<6x392xf32>
    %c0_19 = arith.constant 0 : index
    %c0_20 = arith.constant 0 : index
    %33 = vector.load %arg4[%c0_19, %c0_20] : memref<6x392xf32, #tpu.memory_space<vmem>>, vector<6x392xf32>
    tpu.vector_store %arg4[%c0_19, %c0_20], %32 {strides = array<i32>} : memref<6x392xf32, #tpu.memory_space<vmem>>, vector<6x392xf32>,
    return
  }
  func.func @transform_0(%arg0: i32) -> (i32, i32, i32) {
    %c0_i32 = arith.constant 0 : i32
    %c0_i32_0 = arith.constant 0 : i32
    %c0_i32_1 = arith.constant 0 : i32
    return %c0_i32, %c0_i32_0, %arg0 : i32, i32, i32
  }
  func.func @transform_1(%arg0: i32) -> (i32, i32) {
    %c0_i32 = arith.constant 0 : i32
    %c0_i32_0 = arith.constant 0 : i32
    %c0_i32_1 = arith.constant 0 : i32
    return %c0_i32, %c0_i32_0 : i32, i32
  }
  func.func @transform_2(%arg0: i32) -> (i32, i32) {
    %c0_i32 = arith.constant 0 : i32
    %c0_i32_0 = arith.constant 0 : i32
    %c0_i32_1 = arith.constant 0 : i32
    return %c0_i32, %c0_i32_0 : i32, i32
  }
  func.func @transform_3(%arg0: i32) -> (i32, i32) {
    %c0_i32 = arith.constant 0 : i32
    %c0_i32_0 = arith.constant 0 : i32
    return %c0_i32, %arg0 : i32, i32
  }
}

module attributes {stable_mosaic.version = 11 : i64} {
  func.func @_conv_relu_pool_kernel(%arg0: i32, %arg1: memref<4x150x50xf32, #tpu.memory_space<vmem>>, %arg2: memref<16x150xf32, #tpu.memory_space<vmem>>, %arg3: memref<16x1xf32, #tpu.memory_space<vmem>>, %arg4: memref<16x50xf32, #tpu.memory_space<vmem>>) attributes {dimension_semantics = [#tpu.dimension_semantics<parallel>], iteration_bounds = array<i64: 1>, scalar_prefetch = 0 : i64, scratch_operands = 0 : i64, tpu.core_type = #tpu.core_type<tc>, window_params = [{transform_indices = @transform_0, window_bounds = array<i64: 4, 150, 50>}, {pipeline_mode = #tpu.pipeline_mode<synchronous>, transform_indices = @transform_1, window_bounds = array<i64: 16, 150>}, {pipeline_mode = #tpu.pipeline_mode<synchronous>, transform_indices = @transform_2, window_bounds = array<i64: 16, 1>}, {transform_indices = @transform_3, window_bounds = array<i64: 16, 50>}]} {
    %c0 = arith.constant 0 : index
    %c0_0 = arith.constant 0 : index
    %0 = vector.load %arg2[%c0, %c0_0] : memref<16x150xf32, #tpu.memory_space<vmem>>, vector<16x150xf32>
    %c0_1 = arith.constant 0 : index
    %c0_2 = arith.constant 0 : index
    %1 = vector.load %arg3[%c0_1, %c0_2] : memref<16x1xf32, #tpu.memory_space<vmem>>, vector<16x1xf32>
    %c0_3 = arith.constant 0 : index
    %c0_4 = arith.constant 0 : index
    %c0_5 = arith.constant 0 : index
    %2 = vector.load %arg1[%c0_3, %c0_4, %c0_5] : memref<4x150x50xf32, #tpu.memory_space<vmem>>, vector<1x150x50xf32>
    %3 = vector.shape_cast %2 : vector<1x150x50xf32> to vector<150x50xf32>
    %cst = arith.constant dense<0.000000e+00> : vector<16x50xf32>
    %4 = tpu.matmul %0, %3, %cst {dimension_numbers = #tpu.dot_dimension_numbers<[1], [0], [0], [1], [0, 0, 1, 1], [], []>} : vector<16x150xf32>, vector<150x50xf32>, vector<16x50xf32> -> vector<16x50xf32>
    %5 = vector.broadcast %1 : vector<16x1xf32> to vector<16x50xf32>
    %6 = arith.addf %4, %5 : vector<16x50xf32>
    %cst_6 = arith.constant 0.000000e+00 : f32
    %7 = vector.broadcast %cst_6 : f32 to vector<16x50xf32>
    %8 = arith.maximumf %6, %7 : vector<16x50xf32>
    %c1 = arith.constant 1 : index
    %c0_7 = arith.constant 0 : index
    %c0_8 = arith.constant 0 : index
    %9 = vector.load %arg1[%c1, %c0_7, %c0_8] : memref<4x150x50xf32, #tpu.memory_space<vmem>>, vector<1x150x50xf32>
    %10 = vector.shape_cast %9 : vector<1x150x50xf32> to vector<150x50xf32>
    %cst_9 = arith.constant dense<0.000000e+00> : vector<16x50xf32>
    %11 = tpu.matmul %0, %10, %cst_9 {dimension_numbers = #tpu.dot_dimension_numbers<[1], [0], [0], [1], [0, 0, 1, 1], [], []>} : vector<16x150xf32>, vector<150x50xf32>, vector<16x50xf32> -> vector<16x50xf32>
    %12 = vector.broadcast %1 : vector<16x1xf32> to vector<16x50xf32>
    %13 = arith.addf %11, %12 : vector<16x50xf32>
    %cst_10 = arith.constant 0.000000e+00 : f32
    %14 = vector.broadcast %cst_10 : f32 to vector<16x50xf32>
    %15 = arith.maximumf %13, %14 : vector<16x50xf32>
    %16 = arith.maximumf %8, %15 : vector<16x50xf32>
    %c2 = arith.constant 2 : index
    %c0_11 = arith.constant 0 : index
    %c0_12 = arith.constant 0 : index
    %17 = vector.load %arg1[%c2, %c0_11, %c0_12] : memref<4x150x50xf32, #tpu.memory_space<vmem>>, vector<1x150x50xf32>
    %18 = vector.shape_cast %17 : vector<1x150x50xf32> to vector<150x50xf32>
    %cst_13 = arith.constant dense<0.000000e+00> : vector<16x50xf32>
    %19 = tpu.matmul %0, %18, %cst_13 {dimension_numbers = #tpu.dot_dimension_numbers<[1], [0], [0], [1], [0, 0, 1, 1], [], []>} : vector<16x150xf32>, vector<150x50xf32>, vector<16x50xf32> -> vector<16x50xf32>
    %20 = vector.broadcast %1 : vector<16x1xf32> to vector<16x50xf32>
    %21 = arith.addf %19, %20 : vector<16x50xf32>
    %cst_14 = arith.constant 0.000000e+00 : f32
    %22 = vector.broadcast %cst_14 : f32 to vector<16x50xf32>
    %23 = arith.maximumf %21, %22 : vector<16x50xf32>
    %c3 = arith.constant 3 : index
    %c0_15 = arith.constant 0 : index
    %c0_16 = arith.constant 0 : index
    %24 = vector.load %arg1[%c3, %c0_15, %c0_16] : memref<4x150x50xf32, #tpu.memory_space<vmem>>, vector<1x150x50xf32>
    %25 = vector.shape_cast %24 : vector<1x150x50xf32> to vector<150x50xf32>
    %cst_17 = arith.constant dense<0.000000e+00> : vector<16x50xf32>
    %26 = tpu.matmul %0, %25, %cst_17 {dimension_numbers = #tpu.dot_dimension_numbers<[1], [0], [0], [1], [0, 0, 1, 1], [], []>} : vector<16x150xf32>, vector<150x50xf32>, vector<16x50xf32> -> vector<16x50xf32>
    %27 = vector.broadcast %1 : vector<16x1xf32> to vector<16x50xf32>
    %28 = arith.addf %26, %27 : vector<16x50xf32>
    %cst_18 = arith.constant 0.000000e+00 : f32
    %29 = vector.broadcast %cst_18 : f32 to vector<16x50xf32>
    %30 = arith.maximumf %28, %29 : vector<16x50xf32>
    %31 = arith.maximumf %23, %30 : vector<16x50xf32>
    %32 = arith.maximumf %16, %31 : vector<16x50xf32>
    %c0_19 = arith.constant 0 : index
    %c0_20 = arith.constant 0 : index
    %33 = vector.load %arg4[%c0_19, %c0_20] : memref<16x50xf32, #tpu.memory_space<vmem>>, vector<16x50xf32>
    tpu.vector_store %arg4[%c0_19, %c0_20], %32 {strides = array<i32>} : memref<16x50xf32, #tpu.memory_space<vmem>>, vector<16x50xf32>,
    return
  }
  func.func @transform_0(%arg0: i32) -> (i32, i32, i32) {
    %c0_i32 = arith.constant 0 : i32
    %c0_i32_0 = arith.constant 0 : i32
    %c0_i32_1 = arith.constant 0 : i32
    return %c0_i32, %c0_i32_0, %arg0 : i32, i32, i32
  }
  func.func @transform_1(%arg0: i32) -> (i32, i32) {
    %c0_i32 = arith.constant 0 : i32
    %c0_i32_0 = arith.constant 0 : i32
    %c0_i32_1 = arith.constant 0 : i32
    return %c0_i32, %c0_i32_0 : i32, i32
  }
  func.func @transform_2(%arg0: i32) -> (i32, i32) {
    %c0_i32 = arith.constant 0 : i32
    %c0_i32_0 = arith.constant 0 : i32
    %c0_i32_1 = arith.constant 0 : i32
    return %c0_i32, %c0_i32_0 : i32, i32
  }
  func.func @transform_3(%arg0: i32) -> (i32, i32) {
    %c0_i32 = arith.constant 0 : i32
    %c0_i32_0 = arith.constant 0 : i32
    return %c0_i32, %arg0 : i32, i32
  }
}

module attributes {stable_mosaic.version = 11 : i64} {
  func.func @_fc_stack_kernel(%arg0: i32, %arg1: memref<2x400xf32, #tpu.memory_space<vmem>>, %arg2: memref<400x128xf32, #tpu.memory_space<vmem>>, %arg3: memref<1x128xf32, #tpu.memory_space<vmem>>, %arg4: memref<128x128xf32, #tpu.memory_space<vmem>>, %arg5: memref<1x128xf32, #tpu.memory_space<vmem>>, %arg6: memref<128x128xf32, #tpu.memory_space<vmem>>, %arg7: memref<1x128xf32, #tpu.memory_space<vmem>>, %arg8: memref<2x128xf32, #tpu.memory_space<vmem>>) attributes {dimension_semantics = [#tpu.dimension_semantics<parallel>], iteration_bounds = array<i64: 1>, scalar_prefetch = 0 : i64, scratch_operands = 0 : i64, tpu.core_type = #tpu.core_type<tc>, window_params = [{transform_indices = @transform_0, window_bounds = array<i64: 2, 400>}, {pipeline_mode = #tpu.pipeline_mode<synchronous>, transform_indices = @transform_1, window_bounds = array<i64: 400, 128>}, {pipeline_mode = #tpu.pipeline_mode<synchronous>, transform_indices = @transform_2, window_bounds = array<i64: 1, 128>}, {pipeline_mode = #tpu.pipeline_mode<synchronous>, transform_indices = @transform_3, window_bounds = array<i64: 128, 128>}, {pipeline_mode = #tpu.pipeline_mode<synchronous>, transform_indices = @transform_4, window_bounds = array<i64: 1, 128>}, {pipeline_mode = #tpu.pipeline_mode<synchronous>, transform_indices = @transform_5, window_bounds = array<i64: 128, 128>}, {pipeline_mode = #tpu.pipeline_mode<synchronous>, transform_indices = @transform_6, window_bounds = array<i64: 1, 128>}, {transform_indices = @transform_7, window_bounds = array<i64: 2, 128>}]} {
    %c0 = arith.constant 0 : index
    %c0_0 = arith.constant 0 : index
    %0 = vector.load %arg1[%c0, %c0_0] : memref<2x400xf32, #tpu.memory_space<vmem>>, vector<2x400xf32>
    %c0_1 = arith.constant 0 : index
    %c0_2 = arith.constant 0 : index
    %1 = vector.load %arg2[%c0_1, %c0_2] : memref<400x128xf32, #tpu.memory_space<vmem>>, vector<400x128xf32>
    %cst = arith.constant dense<0.000000e+00> : vector<2x128xf32>
    %2 = tpu.matmul %0, %1, %cst {dimension_numbers = #tpu.dot_dimension_numbers<[1], [0], [0], [1], [0, 0, 1, 1], [], []>} : vector<2x400xf32>, vector<400x128xf32>, vector<2x128xf32> -> vector<2x128xf32>
    %c0_3 = arith.constant 0 : index
    %c0_4 = arith.constant 0 : index
    %3 = vector.load %arg3[%c0_3, %c0_4] : memref<1x128xf32, #tpu.memory_space<vmem>>, vector<1x128xf32>
    %4 = vector.broadcast %3 : vector<1x128xf32> to vector<2x128xf32>
    %5 = arith.addf %2, %4 : vector<2x128xf32>
    %cst_5 = arith.constant 0.000000e+00 : f32
    %6 = vector.broadcast %cst_5 : f32 to vector<2x128xf32>
    %7 = arith.maximumf %5, %6 : vector<2x128xf32>
    %c0_6 = arith.constant 0 : index
    %c0_7 = arith.constant 0 : index
    %8 = vector.load %arg4[%c0_6, %c0_7] : memref<128x128xf32, #tpu.memory_space<vmem>>, vector<128x128xf32>
    %cst_8 = arith.constant dense<0.000000e+00> : vector<2x128xf32>
    %9 = tpu.matmul %7, %8, %cst_8 {dimension_numbers = #tpu.dot_dimension_numbers<[1], [0], [0], [1], [0, 0, 1, 1], [], []>} : vector<2x128xf32>, vector<128x128xf32>, vector<2x128xf32> -> vector<2x128xf32>
    %c0_9 = arith.constant 0 : index
    %c0_10 = arith.constant 0 : index
    %10 = vector.load %arg5[%c0_9, %c0_10] : memref<1x128xf32, #tpu.memory_space<vmem>>, vector<1x128xf32>
    %11 = vector.broadcast %10 : vector<1x128xf32> to vector<2x128xf32>
    %12 = arith.addf %9, %11 : vector<2x128xf32>
    %cst_11 = arith.constant 0.000000e+00 : f32
    %13 = vector.broadcast %cst_11 : f32 to vector<2x128xf32>
    %14 = arith.maximumf %12, %13 : vector<2x128xf32>
    %c0_12 = arith.constant 0 : index
    %c0_13 = arith.constant 0 : index
    %15 = vector.load %arg6[%c0_12, %c0_13] : memref<128x128xf32, #tpu.memory_space<vmem>>, vector<128x128xf32>
    %cst_14 = arith.constant dense<0.000000e+00> : vector<2x128xf32>
    %16 = tpu.matmul %14, %15, %cst_14 {dimension_numbers = #tpu.dot_dimension_numbers<[1], [0], [0], [1], [0, 0, 1, 1], [], []>} : vector<2x128xf32>, vector<128x128xf32>, vector<2x128xf32> -> vector<2x128xf32>
    %c0_15 = arith.constant 0 : index
    %c0_16 = arith.constant 0 : index
    %17 = vector.load %arg7[%c0_15, %c0_16] : memref<1x128xf32, #tpu.memory_space<vmem>>, vector<1x128xf32>
    %18 = vector.broadcast %17 : vector<1x128xf32> to vector<2x128xf32>
    %19 = arith.addf %16, %18 : vector<2x128xf32>
    %c0_17 = arith.constant 0 : index
    %c0_18 = arith.constant 0 : index
    %20 = vector.load %arg8[%c0_17, %c0_18] : memref<2x128xf32, #tpu.memory_space<vmem>>, vector<2x128xf32>
    tpu.vector_store %arg8[%c0_17, %c0_18], %19 {strides = array<i32>} : memref<2x128xf32, #tpu.memory_space<vmem>>, vector<2x128xf32>,
    return
  }
  func.func @transform_0(%arg0: i32) -> (i32, i32) {
    %c0_i32 = arith.constant 0 : i32
    %c0_i32_0 = arith.constant 0 : i32
    return %arg0, %c0_i32 : i32, i32
  }
  func.func @transform_1(%arg0: i32) -> (i32, i32) {
    %c0_i32 = arith.constant 0 : i32
    %c0_i32_0 = arith.constant 0 : i32
    %c0_i32_1 = arith.constant 0 : i32
    return %c0_i32, %c0_i32_0 : i32, i32
  }
  func.func @transform_2(%arg0: i32) -> (i32, i32) {
    %c0_i32 = arith.constant 0 : i32
    %c0_i32_0 = arith.constant 0 : i32
    %c0_i32_1 = arith.constant 0 : i32
    return %c0_i32, %c0_i32_0 : i32, i32
  }
  func.func @transform_3(%arg0: i32) -> (i32, i32) {
    %c0_i32 = arith.constant 0 : i32
    %c0_i32_0 = arith.constant 0 : i32
    %c0_i32_1 = arith.constant 0 : i32
    return %c0_i32, %c0_i32_0 : i32, i32
  }
  func.func @transform_4(%arg0: i32) -> (i32, i32) {
    %c0_i32 = arith.constant 0 : i32
    %c0_i32_0 = arith.constant 0 : i32
    %c0_i32_1 = arith.constant 0 : i32
    return %c0_i32, %c0_i32_0 : i32, i32
  }
  func.func @transform_5(%arg0: i32) -> (i32, i32) {
    %c0_i32 = arith.constant 0 : i32
    %c0_i32_0 = arith.constant 0 : i32
    %c0_i32_1 = arith.constant 0 : i32
    return %c0_i32, %c0_i32_0 : i32, i32
  }
  func.func @transform_6(%arg0: i32) -> (i32, i32) {
    %c0_i32 = arith.constant 0 : i32
    %c0_i32_0 = arith.constant 0 : i32
    %c0_i32_1 = arith.constant 0 : i32
    return %c0_i32, %c0_i32_0 : i32, i32
  }
  func.func @transform_7(%arg0: i32) -> (i32, i32) {
    %c0_i32 = arith.constant 0 : i32
    %c0_i32_0 = arith.constant 0 : i32
    return %arg0, %c0_i32 : i32, i32
  }
}

</mosaic_0001>

<llo_original>
// kernel: net_forward.3
$region0: #{net_forward.3}
  #allocation0 [shape = 'u32[]', space=smem, size = 0x4, offset = 0x4, fixed_abs, tag = 'smem constant byte address 0x4 - core index']
  #allocation1 [shape = 'u32[144,128]{1,0:T(1,128)}', space=vmem, size = 0x12000, scoped, tag = 'internal scratch']
  %s0 = inlined_call_operand.vmem [shape: f32[4,75,392], index: 0, kind: input, shape index: {}]
  %s1 = inlined_call_operand.vmem [shape: f32[6,75], index: 1, kind: input, shape index: {}]
  %s2 = inlined_call_operand.vmem [shape: f32[6,1], index: 2, kind: input, shape index: {}]
  %s3 = inlined_call_operand.vmem [shape: f32[6,392], index: 3, kind: output, shape index: {}]
  %s4 = sld [smem:[#allocation0]]
  $region22: #{net_forward.3} parent=0
    _
  %s6 = ssub.s32 1, %s4
  %s7 = scalar_select 0, %s6, %s4
  // Predicated region
  $region2: #{net_forward.3} parent=0 // pred_check
    _
  $region3: #{net_forward.3} parent=0 // pred_check_branch
    %9 = sbr.rel (0) target = $region5
  $region4: #{net_forward.3} parent=0 // pred_region
    _
  $region5: #{net_forward.3} parent=0 // pred_fallthru
    _
  // Predicated region
  $region6: #{net_forward.3} parent=0 // pred_check
    _
  $region7: #{net_forward.3} parent=0 // pred_check_branch
    %11 = sbr.rel (0) target = $region9
  $region8: #{net_forward.3} parent=0 // pred_region
    _
  $region9: #{net_forward.3} parent=0 // pred_fallthru
    _
  // Predicated region
  $region10: #{net_forward.3} parent=0 // pred_check
    _
  $region11: #{net_forward.3} parent=0 // pred_check_branch
    %13 = sbr.rel (0) target = $region13
  $region12: #{net_forward.3} parent=0 // pred_region
    _
  $region13: #{net_forward.3} parent=0 // pred_fallthru
    _
  %v14 = vld [vmem:[%s1] sm:$0x3f]
  %v15 = vld [vmem:[%s2] sm:$0x3f]
  %v16 = vld [vmem:[%s0] sm:$0xff]
  %v17 = vld [vmem:[%s0 + $0x8] sm:$0xff]
  %v18 = vld [vmem:[%s0 + $0x10] sm:$0xff]
  %v19 = vld [vmem:[%s0 + $0x18] sm:$0xff]
  %v20 = vld [vmem:[%s0 + $0x20] sm:$0xff]
  %v21 = vld [vmem:[%s0 + $0x28] sm:$0xff]
  %v22 = vld [vmem:[%s0 + $0x30] sm:$0xff]
  %v23 = vld [vmem:[%s0 + $0x38] sm:$0xff]
  %v24 = vld [vmem:[%s0 + $0x40] sm:$0xff]
  %v25 = vld [vmem:[%s0 + $0x48] sm:$0xff]
  %v26 = vld [vmem:[%s0 + $0x50] sm:$0xff]
  %v27 = vld [vmem:[%s0 + $0x58] sm:$0xff]
  %v28 = vld [vmem:[%s0 + $0x60] sm:$0xff]
  %v29 = vld [vmem:[%s0 + $0x68] sm:$0xff]
  %v30 = vld [vmem:[%s0 + $0x70] sm:$0xff]
  %v31 = vld [vmem:[%s0 + $0x78] sm:$0xff]
  %v32 = vld [vmem:[%s0 + $0x80] sm:$0xff]
  %v33 = vld [vmem:[%s0 + $0x88] sm:$0xff]
  %v34 = vld [vmem:[%s0 + $0x90] sm:$0xff]
  %v35 = vld [vmem:[%s0 + $0x98] sm:$0xff]
  %v36 = vld [vmem:[%s0 + $0xa0] sm:$0xff]
  %v37 = vld [vmem:[%s0 + $0xa8] sm:$0xff]
  %v38 = vld [vmem:[%s0 + $0xb0] sm:$0xff]
  %v39 = vld [vmem:[%s0 + $0xb8] sm:$0xff]
  %v40 = vld [vmem:[%s0 + $0xc0] sm:$0xff]
  %v41 = vld [vmem:[%s0 + $0xc8] sm:$0xff]
  %v42 = vld [vmem:[%s0 + $0xd0] sm:$0xff]
  %v43 = vld [vmem:[%s0 + $0xd8] sm:$0xff]
  %v44 = vld [vmem:[%s0 + $0xe0] sm:$0xff]
  %v45 = vld [vmem:[%s0 + $0xe8] sm:$0xff]
  %v46 = vld [vmem:[%s0 + $0xf0] sm:$0xff]
  %v47 = vld [vmem:[%s0 + $0xf8] sm:$0xff]
  %v48 = vld [vmem:[%s0 + $0x100] sm:$0xff]
  %v49 = vld [vmem:[%s0 + $0x108] sm:$0xff]
  %v50 = vld [vmem:[%s0 + $0x110] sm:$0xff]
  %v51 = vld [vmem:[%s0 + $0x118] sm:$0xff]
  %v52 = vld [vmem:[%s0 + $0x120] sm:$0x7]
  %v53 = vld [vmem:[%s0 + $0x128] sm:$0x7]
  %v54 = vld [vmem:[%s0 + $0x130] sm:$0x7]
  %v55 = vld [vmem:[%s0 + $0x138] sm:$0x7]
  %57 = vset.pattern.permute.xlu0 0
  %58 = vperm.xlu0 %57, %v15
  %v59 = vpop.permute.xlu0 %58
  %vm61 = vcmask 613376
  %v63 = vsel %vm61, %v14, 0
  %vm65 = vcmask 1042432
  %v67 = vsel %vm65, %v52, 0
  %v70 = vsel %vm65, %v53, 0
  %v73 = vsel %vm65, %v54, 0
  %v76 = vsel %vm65, %v55, 0
  %78 = vmatprep.subr.mxu0 %v17
  %79 = vmatpush1.msra.mxu0 %v16
  %80 = vmatprep.subr.mxu0 %v21
  %81 = vmatpush1.msra.mxu0 %v20
  %82 = vmatprep.subr.mxu0 %v25
  %83 = vmatpush1.msra.mxu0 %v24
  %84 = vmatprep.subr.mxu0 %v29
  %85 = vmatpush1.msra.mxu0 %v28
  %86 = vmatprep.subr.mxu0 %v33
  %87 = vmatpush1.msra.mxu0 %v32
  %88 = vmatprep.subr.mxu0 %v37
  %89 = vmatpush1.msra.mxu0 %v36
  %90 = vmatprep.subr.mxu0 %v41
  %91 = vmatpush1.msra.mxu0 %v40
  %92 = vmatprep.subr.mxu0 %v45
  %93 = vmatpush1.msra.mxu0 %v44
  %94 = vmatprep.subr.mxu0 %v49
  %95 = vmatpush1.msra.mxu0 %v48
  %96 = vmatprep.subr.mxu0 %v70
  %97 = vmatpush1.msra.mxu0 %v67
  %98 = vmatprep.subr.mxu0 0.0
  %99 = vmatpush1.msra.mxu0 0.0
  %100 = vmatprep.subr.mxu0 0.0
  %101 = vmatpush1.msra.mxu0 0.0
  %102 = vmatprep.subr.mxu0 0.0
  %103 = vmatpush1.msra.mxu0 0.0
  %104 = vmatprep.subr.mxu0 0.0
  %105 = vmatpush1.msra.mxu0 0.0
  %106 = vmatprep.subr.mxu0 0.0
  %107 = vmatpush1.msra.mxu0 0.0
  %108 = vmatprep.subr.mxu0 0.0
  %109 = vmatpush1.msra.mxu0 0.0
  %110 = vmatprep.subr.mxu0 0.0
  %111 = vmatpush1.msra.mxu0 0.0
  %112 = vmatprep.subr.mxu0 0.0
  %113 = vmatpush1.msra.mxu0 0.0
  %114 = vmatprep.subr.mxu0 0.0
  %115 = vmatpush1.msra.mxu0 0.0
  %116 = vmatprep.subr.mxu0 0.0
  %117 = vmatpush1.msra.mxu0 0.0
  %118 = vmatprep.subr.mxu0 0.0
  %119 = vmatpush1.msra.mxu0 0.0
  %120 = vmatprep.subr.mxu0 0.0
  %121 = vmatpush1.msra.mxu0 0.0
  %122 = vmatprep.subr.mxu0 0.0
  %123 = vmatpush1.msra.mxu0 0.0
  %124 = vmatprep.subr.mxu0 0.0
  %125 = vmatpush1.msra.mxu0 0.0
  %126 = vmatprep.subr.mxu0 0.0
  %127 = vmatpush1.msra.mxu0 0.0
  %128 = vmatprep.subr.mxu0 0.0
  %129 = vmatpush1.msra.mxu0 0.0
  %130 = vmatprep.subr.mxu0 0.0
  %131 = vmatpush1.msra.mxu0 0.0
  %132 = vmatprep.subr.mxu0 0.0
  %133 = vmatpush1.msra.mxu0 0.0
  %134 = vmatprep.subr.mxu0 0.0
  %135 = vmatpush1.msra.mxu0 0.0
  %136 = vmatprep.subr.mxu0 0.0
  %137 = vmatpush1.msra.mxu0 0.0
  %138 = vmatprep.subr.mxu0 0.0
  %139 = vmatpush1.msra.mxu0 0.0
  %140 = vmatprep.subr.mxu0 0.0
  %141 = vmatpush1.msra.mxu0 0.0
  %142 = vmatprep.mubr.f32.mxu0 0.0
  %143 = vmatmul.mubr.f32.gmra.mrb[0].mxu0 %v63
  %v144 = vpop.f32.mrb[0].mxu0
  %v145 = vadd.f32 %v59, %v144
  %v146 = vpop.f32.mrb[0].mxu0
  %v147 = vadd.f32 %v59, %v146
  %148 = vdwg.mxu0
  %149 = vmatprep.subr.mxu0 %v19
  %150 = vmatpush1.msra.mxu0 %v18
  %151 = vmatprep.subr.mxu0 %v23
  %152 = vmatpush1.msra.mxu0 %v22
  %153 = vmatprep.subr.mxu0 %v27
  %154 = vmatpush1.msra.mxu0 %v26
  %155 = vmatprep.subr.mxu0 %v31
  %156 = vmatpush1.msra.mxu0 %v30
  %157 = vmatprep.subr.mxu0 %v35
  %158 = vmatpush1.msra.mxu0 %v34
  %159 = vmatprep.subr.mxu0 %v39
  %160 = vmatpush1.msra.mxu0 %v38
  %161 = vmatprep.subr.mxu0 %v43
  %162 = vmatpush1.msra.mxu0 %v42
  %163 = vmatprep.subr.mxu0 %v47
  %164 = vmatpush1.msra.mxu0 %v46
  %165 = vmatprep.subr.mxu0 %v51
  %166 = vmatpush1.msra.mxu0 %v50
  %167 = vmatprep.subr.mxu0 %v76
  %168 = vmatpush1.msra.mxu0 %v73
  %169 = vmatprep.subr.mxu0 0.0
  %170 = vmatpush1.msra.mxu0 0.0
  %171 = vmatprep.subr.mxu0 0.0
  %172 = vmatpush1.msra.mxu0 0.0
  %173 = vmatprep.subr.mxu0 0.0
  %174 = vmatpush1.msra.mxu0 0.0
  %175 = vmatprep.subr.mxu0 0.0
  %176 = vmatpush1.msra.mxu0 0.0
  %177 = vmatprep.subr.mxu0 0.0
  %178 = vmatpush1.msra.mxu0 0.0
  %179 = vmatprep.subr.mxu0 0.0
  %180 = vmatpush1.msra.mxu0 0.0
  %181 = vmatprep.subr.mxu0 0.0
  %182 = vmatpush1.msra.mxu0 0.0
  %183 = vmatprep.subr.mxu0 0.0
  %184 = vmatpush1.msra.mxu0 0.0
  %185 = vmatprep.subr.mxu0 0.0
  %186 = vmatpush1.msra.mxu0 0.0
  %187 = vmatprep.subr.mxu0 0.0
  %188 = vmatpush1.msra.mxu0 0.0
  %189 = vmatprep.subr.mxu0 0.0
  %190 = vmatpush1.msra.mxu0 0.0
  %191 = vmatprep.subr.mxu0 0.0
  %192 = vmatpush1.msra.mxu0 0.0
  %193 = vmatprep.subr.mxu0 0.0
  %194 = vmatpush1.msra.mxu0 0.0
  %195 = vmatprep.subr.mxu0 0.0
  %196 = vmatpush1.msra.mxu0 0.0
  %197 = vmatprep.subr.mxu0 0.0
  %198 = vmatpush1.msra.mxu0 0.0
  %199 = vmatprep.subr.mxu0 0.0
  %200 = vmatpush1.msra.mxu0 0.0
  %201 = vmatprep.subr.mxu0 0.0
  %202 = vmatpush1.msra.mxu0 0.0
  %203 = vmatprep.subr.mxu0 0.0
  %204 = vmatpush1.msra.mxu0 0.0
  %205 = vmatprep.subr.mxu0 0.0
  %206 = vmatpush1.msra.mxu0 0.0
  %207 = vmatprep.subr.mxu0 0.0
  %208 = vmatpush1.msra.mxu0 0.0
  %209 = vmatprep.subr.mxu0 0.0
  %210 = vmatpush1.msra.mxu0 0.0
  %211 = vmatprep.subr.mxu0 0.0
  %212 = vmatpush1.msra.mxu0 0.0
  %213 = vmatprep.mubr.f32.mxu0 0.0
  %214 = vmatmul.mubr.f32.gmra.mrb[0].mxu0 %v63
  %v215 = vpop.f32.mrb[0].mxu0
  %v216 = vadd.f32 %v59, %v215
  %v217 = vpop.f32.mrb[0].mxu0
  %v218 = vadd.f32 %v59, %v217
  %219 = vdwg.mxu0
  %v220 = vmax.f32 %v145, 0.0
  %v221 = vmax.f32 %v147, 0.0
  %v222 = vmax.f32 %v216, 0.0
  %v223 = vmax.f32 %v218, 0.0
  %s224 = scalar_lea.vmem %s0, 320
  %v225 = vld [vmem:[%s224] sm:$0xff]
  %v226 = vld [vmem:[%s224 + $0x8] sm:$0xff]
  %v227 = vld [vmem:[%s224 + $0x10] sm:$0xff]
  %v228 = vld [vmem:[%s224 + $0x18] sm:$0xff]
  %v229 = vld [vmem:[%s224 + $0x20] sm:$0xff]
  %v230 = vld [vmem:[%s224 + $0x28] sm:$0xff]
  %v231 = vld [vmem:[%s224 + $0x30] sm:$0xff]
  %v232 = vld [vmem:[%s224 + $0x38] sm:$0xff]
  %v233 = vld [vmem:[%s224 + $0x40] sm:$0xff]
  %v234 = vld [vmem:[%s224 + $0x48] sm:$0xff]
  %v235 = vld [vmem:[%s224 + $0x50] sm:$0xff]
  %v236 = vld [vmem:[%s224 + $0x58] sm:$0xff]
  %v237 = vld [vmem:[%s224 + $0x60] sm:$0xff]
  %v238 = vld [vmem:[%s224 + $0x68] sm:$0xff]
  %v239 = vld [vmem:[%s224 + $0x70] sm:$0xff]
  %v240 = vld [vmem:[%s224 + $0x78] sm:$0xff]
  %v241 = vld [vmem:[%s224 + $0x80] sm:$0xff]
  %v242 = vld [vmem:[%s224 + $0x88] sm:$0xff]
  %v243 = vld [vmem:[%s224 + $0x90] sm:$0xff]
  %v244 = vld [vmem:[%s224 + $0x98] sm:$0xff]
  %v245 = vld [vmem:[%s224 + $0xa0] sm:$0xff]
  %v246 = vld [vmem:[%s224 + $0xa8] sm:$0xff]
  %v247 = vld [vmem:[%s224 + $0xb0] sm:$0xff]
  %v248 = vld [vmem:[%s224 + $0xb8] sm:$0xff]
  %v249 = vld [vmem:[%s224 + $0xc0] sm:$0xff]
  %v250 = vld [vmem:[%s224 + $0xc8] sm:$0xff]
  %v251 = vld [vmem:[%s224 + $0xd0] sm:$0xff]
  %v252 = vld [vmem:[%s224 + $0xd8] sm:$0xff]
  %v253 = vld [vmem:[%s224 + $0xe0] sm:$0xff]
  %v254 = vld [vmem:[%s224 + $0xe8] sm:$0xff]
  %v255 = vld [vmem:[%s224 + $0xf0] sm:$0xff]
  %v256 = vld [vmem:[%s224 + $0xf8] sm:$0xff]
  %v257 = vld [vmem:[%s224 + $0x100] sm:$0xff]
  %v258 = vld [vmem:[%s224 + $0x108] sm:$0xff]
  %v259 = vld [vmem:[%s224 + $0x110] sm:$0xff]
  %v260 = vld [vmem:[%s224 + $0x118] sm:$0xff]
  %v261 = vld [vmem:[%s224 + $0x120] sm:$0x7]
  %v262 = vld [vmem:[%s224 + $0x128] sm:$0x7]
  %v263 = vld [vmem:[%s224 + $0x130] sm:$0x7]
  %v264 = vld [vmem:[%s224 + $0x138] sm:$0x7]
  %v266 = vsel %vm65, %v261, 0
  %v269 = vsel %vm65, %v262, 0
  %v272 = vsel %vm65, %v263, 0
  %v275 = vsel %vm65, %v264, 0
  %277 = vmatprep.subr.mxu0 %v226
  %278 = vmatpush1.msra.mxu0 %v225
  %279 = vmatprep.subr.mxu0 %v230
  %280 = vmatpush1.msra.mxu0 %v229
  %281 = vmatprep.subr.mxu0 %v234
  %282 = vmatpush1.msra.mxu0 %v233
  %283 = vmatprep.subr.mxu0 %v238
  %284 = vmatpush1.msra.mxu0 %v237
  %285 = vmatprep.subr.mxu0 %v242
  %286 = vmatpush1.msra.mxu0 %v241
  %287 = vmatprep.subr.mxu0 %v246
  %288 = vmatpush1.msra.mxu0 %v245
  %289 = vmatprep.subr.mxu0 %v250
  %290 = vmatpush1.msra.mxu0 %v249
  %291 = vmatprep.subr.mxu0 %v254
  %292 = vmatpush1.msra.mxu0 %v253
  %293 = vmatprep.subr.mxu0 %v258
  %294 = vmatpush1.msra.mxu0 %v257
  %295 = vmatprep.subr.mxu0 %v269
  %296 = vmatpush1.msra.mxu0 %v266
  %297 = vmatprep.subr.mxu0 0.0
  %298 = vmatpush1.msra.mxu0 0.0
  %299 = vmatprep.subr.mxu0 0.0
  %300 = vmatpush1.msra.mxu0 0.0
  %301 = vmatprep.subr.mxu0 0.0
  %302 = vmatpush1.msra.mxu0 0.0
  %303 = vmatprep.subr.mxu0 0.0
  %304 = vmatpush1.msra.mxu0 0.0
  %305 = vmatprep.subr.mxu0 0.0
  %306 = vmatpush1.msra.mxu0 0.0
  %307 = vmatprep.subr.mxu0 0.0
  %308 = vmatpush1.msra.mxu0 0.0
  %309 = vmatprep.subr.mxu0 0.0
  %310 = vmatpush1.msra.mxu0 0.0
  %311 = vmatprep.subr.mxu0 0.0
  %312 = vmatpush1.msra.mxu0 0.0
  %313 = vmatprep.subr.mxu0 0.0
  %314 = vmatpush1.msra.mxu0 0.0
  %315 = vmatprep.subr.mxu0 0.0
  %316 = vmatpush1.msra.mxu0 0.0
  %317 = vmatprep.subr.mxu0 0.0
  %318 = vmatpush1.msra.mxu0 0.0
  %319 = vmatprep.subr.mxu0 0.0
  %320 = vmatpush1.msra.mxu0 0.0
  %321 = vmatprep.subr.mxu0 0.0
  %322 = vmatpush1.msra.mxu0 0.0
  %323 = vmatprep.subr.mxu0 0.0
  %324 = vmatpush1.msra.mxu0 0.0
  %325 = vmatprep.subr.mxu0 0.0
  %326 = vmatpush1.msra.mxu0 0.0
  %327 = vmatprep.subr.mxu0 0.0
  %328 = vmatpush1.msra.mxu0 0.0
  %329 = vmatprep.subr.mxu0 0.0
  %330 = vmatpush1.msra.mxu0 0.0
  %331 = vmatprep.subr.mxu0 0.0
  %332 = vmatpush1.msra.mxu0 0.0
  %333 = vmatprep.subr.mxu0 0.0
  %334 = vmatpush1.msra.mxu0 0.0
  %335 = vmatprep.subr.mxu0 0.0
  %336 = vmatpush1.msra.mxu0 0.0
  %337 = vmatprep.subr.mxu0 0.0
  %338 = vmatpush1.msra.mxu0 0.0
  %339 = vmatprep.subr.mxu0 0.0
  %340 = vmatpush1.msra.mxu0 0.0
  %341 = vmatprep.mubr.f32.mxu0 0.0
  %342 = vmatmul.mubr.f32.gmra.mrb[0].mxu0 %v63
  %v343 = vpop.f32.mrb[0].mxu0
  %v344 = vadd.f32 %v59, %v343
  %v345 = vpop.f32.mrb[0].mxu0
  %v346 = vadd.f32 %v59, %v345
  %347 = vdwg.mxu0
  %348 = vmatprep.subr.mxu0 %v228
  %349 = vmatpush1.msra.mxu0 %v227
  %350 = vmatprep.subr.mxu0 %v232
  %351 = vmatpush1.msra.mxu0 %v231
  %352 = vmatprep.subr.mxu0 %v236
  %353 = vmatpush1.msra.mxu0 %v235
  %354 = vmatprep.subr.mxu0 %v240
  %355 = vmatpush1.msra.mxu0 %v239
  %356 = vmatprep.subr.mxu0 %v244
  %357 = vmatpush1.msra.mxu0 %v243
  %358 = vmatprep.subr.mxu0 %v248
  %359 = vmatpush1.msra.mxu0 %v247
  %360 = vmatprep.subr.mxu0 %v252
  %361 = vmatpush1.msra.mxu0 %v251
  %362 = vmatprep.subr.mxu0 %v256
  %363 = vmatpush1.msra.mxu0 %v255
  %364 = vmatprep.subr.mxu0 %v260
  %365 = vmatpush1.msra.mxu0 %v259
  %366 = vmatprep.subr.mxu0 %v275
  %367 = vmatpush1.msra.mxu0 %v272
  %368 = vmatprep.subr.mxu0 0.0
  %369 = vmatpush1.msra.mxu0 0.0
  %370 = vmatprep.subr.mxu0 0.0
  %371 = vmatpush1.msra.mxu0 0.0
  %372 = vmatprep.subr.mxu0 0.0
  %373 = vmatpush1.msra.mxu0 0.0
  %374 = vmatprep.subr.mxu0 0.0
  %375 = vmatpush1.msra.mxu0 0.0
  %376 = vmatprep.subr.mxu0 0.0
  %377 = vmatpush1.msra.mxu0 0.0
  %378 = vmatprep.subr.mxu0 0.0
  %379 = vmatpush1.msra.mxu0 0.0
  %380 = vmatprep.subr.mxu0 0.0
  %381 = vmatpush1.msra.mxu0 0.0
  %382 = vmatprep.subr.mxu0 0.0
  %383 = vmatpush1.msra.mxu0 0.0
  %384 = vmatprep.subr.mxu0 0.0
  %385 = vmatpush1.msra.mxu0 0.0
  %386 = vmatprep.subr.mxu0 0.0
  %387 = vmatpush1.msra.mxu0 0.0
  %388 = vmatprep.subr.mxu0 0.0
  %389 = vmatpush1.msra.mxu0 0.0
  %390 = vmatprep.subr.mxu0 0.0
  %391 = vmatpush1.msra.mxu0 0.0
  %392 = vmatprep.subr.mxu0 0.0
  %393 = vmatpush1.msra.mxu0 0.0
  %394 = vmatprep.subr.mxu0 0.0
  %395 = vmatpush1.msra.mxu0 0.0
  %396 = vmatprep.subr.mxu0 0.0
  %397 = vmatpush1.msra.mxu0 0.0
  %398 = vmatprep.subr.mxu0 0.0
  %399 = vmatpush1.msra.mxu0 0.0
  %400 = vmatprep.subr.mxu0 0.0
  %401 = vmatpush1.msra.mxu0 0.0
  %402 = vmatprep.subr.mxu0 0.0
  %403 = vmatpush1.msra.mxu0 0.0
  %404 = vmatprep.subr.mxu0 0.0
  %405 = vmatpush1.msra.mxu0 0.0
  %406 = vmatprep.subr.mxu0 0.0
  %407 = vmatpush1.msra.mxu0 0.0
  %408 = vmatprep.subr.mxu0 0.0
  %409 = vmatpush1.msra.mxu0 0.0
  %410 = vmatprep.subr.mxu0 0.0
  %411 = vmatpush1.msra.mxu0 0.0
  %412 = vmatprep.mubr.f32.mxu0 0.0
  %413 = vmatmul.mubr.f32.gmra.mrb[0].mxu0 %v63
  %v414 = vpop.f32.mrb[0].mxu0
  %v415 = vadd.f32 %v59, %v414
  %v416 = vpop.f32.mrb[0].mxu0
  %v417 = vadd.f32 %v59, %v416
  %418 = vdwg.mxu0
  %v419 = vmax.f32 %v344, 0.0
  %v420 = vmax.f32 %v346, 0.0
  %v421 = vmax.f32 %v415, 0.0
  %v422 = vmax.f32 %v417, 0.0
  %v423 = vmax.f32 %v220, %v419
  %v424 = vmax.f32 %v221, %v420
  %v425 = vmax.f32 %v222, %v421
  %v426 = vmax.f32 %v223, %v422
  %s427 = scalar_lea.vmem %s0, 640
  %v428 = vld [vmem:[%s427] sm:$0xff]
  %v429 = vld [vmem:[%s427 + $0x8] sm:$0xff]
  %v430 = vld [vmem:[%s427 + $0x10] sm:$0xff]
  %v431 = vld [vmem:[%s427 + $0x18] sm:$0xff]
  %v432 = vld [vmem:[%s427 + $0x20] sm:$0xff]
  %v433 = vld [vmem:[%s427 + $0x28] sm:$0xff]
  %v434 = vld [vmem:[%s427 + $0x30] sm:$0xff]
  %v435 = vld [vmem:[%s427 + $0x38] sm:$0xff]
  %v436 = vld [vmem:[%s427 + $0x40] sm:$0xff]
  %v437 = vld [vmem:[%s427 + $0x48] sm:$0xff]
  %v438 = vld [vmem:[%s427 + $0x50] sm:$0xff]
  %v439 = vld [vmem:[%s427 + $0x58] sm:$0xff]
  %v440 = vld [vmem:[%s427 + $0x60] sm:$0xff]
  %v441 = vld [vmem:[%s427 + $0x68] sm:$0xff]
  %v442 = vld [vmem:[%s427 + $0x70] sm:$0xff]
  %v443 = vld [vmem:[%s427 + $0x78] sm:$0xff]
  %v444 = vld [vmem:[%s427 + $0x80] sm:$0xff]
  %v445 = vld [vmem:[%s427 + $0x88] sm:$0xff]
  %v446 = vld [vmem:[%s427 + $0x90] sm:$0xff]
  %v447 = vld [vmem:[%s427 + $0x98] sm:$0xff]
  %v448 = vld [vmem:[%s427 + $0xa0] sm:$0xff]
  %v449 = vld [vmem:[%s427 + $0xa8] sm:$0xff]
  %v450 = vld [vmem:[%s427 + $0xb0] sm:$0xff]
  %v451 = vld [vmem:[%s427 + $0xb8] sm:$0xff]
  %v452 = vld [vmem:[%s427 + $0xc0] sm:$0xff]
  %v453 = vld [vmem:[%s427 + $0xc8] sm:$0xff]
  %v454 = vld [vmem:[%s427 + $0xd0] sm:$0xff]
  %v455 = vld [vmem:[%s427 + $0xd8] sm:$0xff]
  %v456 = vld [vmem:[%s427 + $0xe0] sm:$0xff]
  %v457 = vld [vmem:[%s427 + $0xe8] sm:$0xff]
  %v458 = vld [vmem:[%s427 + $0xf0] sm:$0xff]
  %v459 = vld [vmem:[%s427 + $0xf8] sm:$0xff]
  %v460 = vld [vmem:[%s427 + $0x100] sm:$0xff]
  %v461 = vld [vmem:[%s427 + $0x108] sm:$0xff]
  %v462 = vld [vmem:[%s427 + $0x110] sm:$0xff]
  %v463 = vld [vmem:[%s427 + $0x118] sm:$0xff]
  %v464 = vld [vmem:[%s427 + $0x120] sm:$0x7]
  %v465 = vld [vmem:[%s427 + $0x128] sm:$0x7]
  %v466 = vld [vmem:[%s427 + $0x130] sm:$0x7]
  %v467 = vld [vmem:[%s427 + $0x138] sm:$0x7]
  %v469 = vsel %vm65, %v464, 0
  %v472 = vsel %vm65, %v465, 0
  %v475 = vsel %vm65, %v466, 0
  %v478 = vsel %vm65, %v467, 0
  %480 = vmatprep.subr.mxu0 %v429
  %481 = vmatpush1.msra.mxu0 %v428
  %482 = vmatprep.subr.mxu0 %v433
  %483 = vmatpush1.msra.mxu0 %v432
  %484 = vmatprep.subr.mxu0 %v437
  %485 = vmatpush1.msra.mxu0 %v436
  %486 = vmatprep.subr.mxu0 %v441
  %487 = vmatpush1.msra.mxu0 %v440
  %488 = vmatprep.subr.mxu0 %v445
  %489 = vmatpush1.msra.mxu0 %v444
  %490 = vmatprep.subr.mxu0 %v449
  %491 = vmatpush1.msra.mxu0 %v448
  %492 = vmatprep.subr.mxu0 %v453
  %493 = vmatpush1.msra.mxu0 %v452
  %494 = vmatprep.subr.mxu0 %v457
  %495 = vmatpush1.msra.mxu0 %v456
  %496 = vmatprep.subr.mxu0 %v461
  %497 = vmatpush1.msra.mxu0 %v460
  %498 = vmatprep.subr.mxu0 %v472
  %499 = vmatpush1.msra.mxu0 %v469
  %500 = vmatprep.subr.mxu0 0.0
  %501 = vmatpush1.msra.mxu0 0.0
  %502 = vmatprep.subr.mxu0 0.0
  %503 = vmatpush1.msra.mxu0 0.0
  %504 = vmatprep.subr.mxu0 0.0
  %505 = vmatpush1.msra.mxu0 0.0
  %506 = vmatprep.subr.mxu0 0.0
  %507 = vmatpush1.msra.mxu0 0.0
  %508 = vmatprep.subr.mxu0 0.0
  %509 = vmatpush1.msra.mxu0 0.0
  %510 = vmatprep.subr.mxu0 0.0
  %511 = vmatpush1.msra.mxu0 0.0
  %512 = vmatprep.subr.mxu0 0.0
  %513 = vmatpush1.msra.mxu0 0.0
  %514 = vmatprep.subr.mxu0 0.0
  %515 = vmatpush1.msra.mxu0 0.0
  %516 = vmatprep.subr.mxu0 0.0
  %517 = vmatpush1.msra.mxu0 0.0
  %518 = vmatprep.subr.mxu0 0.0
  %519 = vmatpush1.msra.mxu0 0.0
  %520 = vmatprep.subr.mxu0 0.0
  %521 = vmatpush1.msra.mxu0 0.0
  %522 = vmatprep.subr.mxu0 0.0
  %523 = vmatpush1.msra.mxu0 0.0
  %524 = vmatprep.subr.mxu0 0.0
  %525 = vmatpush1.msra.mxu0 0.0
  %526 = vmatprep.subr.mxu0 0.0
  %527 = vmatpush1.msra.mxu0 0.0
  %528 = vmatprep.subr.mxu0 0.0
  %529 = vmatpush1.msra.mxu0 0.0
  %530 = vmatprep.subr.mxu0 0.0
  %531 = vmatpush1.msra.mxu0 0.0
  %532 = vmatprep.subr.mxu0 0.0
  %533 = vmatpush1.msra.mxu0 0.0
  %534 = vmatprep.subr.mxu0 0.0
  %535 = vmatpush1.msra.mxu0 0.0
  %536 = vmatprep.subr.mxu0 0.0
  %537 = vmatpush1.msra.mxu0 0.0
  %538 = vmatprep.subr.mxu0 0.0
  %539 = vmatpush1.msra.mxu0 0.0
  %540 = vmatprep.subr.mxu0 0.0
  %541 = vmatpush1.msra.mxu0 0.0
  %542 = vmatprep.subr.mxu0 0.0
  %543 = vmatpush1.msra.mxu0 0.0
  %544 = vmatprep.mubr.f32.mxu0 0.0
  %545 = vmatmul.mubr.f32.gmra.mrb[0].mxu0 %v63
  %v546 = vpop.f32.mrb[0].mxu0
  %v547 = vadd.f32 %v59, %v546
  %v548 = vpop.f32.mrb[0].mxu0
  %v549 = vadd.f32 %v59, %v548
  %550 = vdwg.mxu0
  %551 = vmatprep.subr.mxu0 %v431
  %552 = vmatpush1.msra.mxu0 %v430
  %553 = vmatprep.subr.mxu0 %v435
  %554 = vmatpush1.msra.mxu0 %v434
  %555 = vmatprep.subr.mxu0 %v439
  %556 = vmatpush1.msra.mxu0 %v438
  %557 = vmatprep.subr.mxu0 %v443
  %558 = vmatpush1.msra.mxu0 %v442
  %559 = vmatprep.subr.mxu0 %v447
  %560 = vmatpush1.msra.mxu0 %v446
  %561 = vmatprep.subr.mxu0 %v451
  %562 = vmatpush1.msra.mxu0 %v450
  %563 = vmatprep.subr.mxu0 %v455
  %564 = vmatpush1.msra.mxu0 %v454
  %565 = vmatprep.subr.mxu0 %v459
  %566 = vmatpush1.msra.mxu0 %v458
  %567 = vmatprep.subr.mxu0 %v463
  %568 = vmatpush1.msra.mxu0 %v462
  %569 = vmatprep.subr.mxu0 %v478
  %570 = vmatpush1.msra.mxu0 %v475
  %571 = vmatprep.subr.mxu0 0.0
  %572 = vmatpush1.msra.mxu0 0.0
  %573 = vmatprep.subr.mxu0 0.0
  %574 = vmatpush1.msra.mxu0 0.0
  %575 = vmatprep.subr.mxu0 0.0
  %576 = vmatpush1.msra.mxu0 0.0
  %577 = vmatprep.subr.mxu0 0.0
  %578 = vmatpush1.msra.mxu0 0.0
  %579 = vmatprep.subr.mxu0 0.0
  %580 = vmatpush1.msra.mxu0 0.0
  %581 = vmatprep.subr.mxu0 0.0
  %582 = vmatpush1.msra.mxu0 0.0
  %583 = vmatprep.subr.mxu0 0.0
  %584 = vmatpush1.msra.mxu0 0.0
  %585 = vmatprep.subr.mxu0 0.0
  %586 = vmatpush1.msra.mxu0 0.0
  %587 = vmatprep.subr.mxu0 0.0
  %588 = vmatpush1.msra.mxu0 0.0
  %589 = vmatprep.subr.mxu0 0.0
  %590 = vmatpush1.msra.mxu0 0.0
  %591 = vmatprep.subr.mxu0 0.0
  %592 = vmatpush1.msra.mxu0 0.0
  %593 = vmatprep.subr.mxu0 0.0
  %594 = vmatpush1.msra.mxu0 0.0
  %595 = vmatprep.subr.mxu0 0.0
  %596 = vmatpush1.msra.mxu0 0.0
  %597 = vmatprep.subr.mxu0 0.0
  %598 = vmatpush1.msra.mxu0 0.0
  %599 = vmatprep.subr.mxu0 0.0
  %600 = vmatpush1.msra.mxu0 0.0
  %601 = vmatprep.subr.mxu0 0.0
  %602 = vmatpush1.msra.mxu0 0.0
  %603 = vmatprep.subr.mxu0 0.0
  %604 = vmatpush1.msra.mxu0 0.0
  %605 = vmatprep.subr.mxu0 0.0
  %606 = vmatpush1.msra.mxu0 0.0
  %607 = vmatprep.subr.mxu0 0.0
  %608 = vmatpush1.msra.mxu0 0.0
  %609 = vmatprep.subr.mxu0 0.0
  %610 = vmatpush1.msra.mxu0 0.0
  %611 = vmatprep.subr.mxu0 0.0
  %612 = vmatpush1.msra.mxu0 0.0
  %613 = vmatprep.subr.mxu0 0.0
  %614 = vmatpush1.msra.mxu0 0.0
  %615 = vmatprep.mubr.f32.mxu0 0.0
  %616 = vmatmul.mubr.f32.gmra.mrb[0].mxu0 %v63
  %v617 = vpop.f32.mrb[0].mxu0
  %v618 = vadd.f32 %v59, %v617
  %v619 = vpop.f32.mrb[0].mxu0
  %v620 = vadd.f32 %v59, %v619
  %621 = vdwg.mxu0
  %v622 = vmax.f32 %v547, 0.0
  %v623 = vmax.f32 %v549, 0.0
  %v624 = vmax.f32 %v618, 0.0
  %v625 = vmax.f32 %v620, 0.0
  %s626 = scalar_lea.vmem %s0, 960
  %v627 = vld [vmem:[%s626] sm:$0xff]
  %v628 = vld [vmem:[%s626 + $0x8] sm:$0xff]
  %v629 = vld [vmem:[%s626 + $0x10] sm:$0xff]
  %v630 = vld [vmem:[%s626 + $0x18] sm:$0xff]
  %v631 = vld [vmem:[%s626 + $0x20] sm:$0xff]
  %v632 = vld [vmem:[%s626 + $0x28] sm:$0xff]
  %v633 = vld [vmem:[%s626 + $0x30] sm:$0xff]
  %v634 = vld [vmem:[%s626 + $0x38] sm:$0xff]
  %v635 = vld [vmem:[%s626 + $0x40] sm:$0xff]
  %v636 = vld [vmem:[%s626 + $0x48] sm:$0xff]
  %v637 = vld [vmem:[%s626 + $0x50] sm:$0xff]
  %v638 = vld [vmem:[%s626 + $0x58] sm:$0xff]
  %v639 = vld [vmem:[%s626 + $0x60] sm:$0xff]
  %v640 = vld [vmem:[%s626 + $0x68] sm:$0xff]
  %v641 = vld [vmem:[%s626 + $0x70] sm:$0xff]
  %v642 = vld [vmem:[%s626 + $0x78] sm:$0xff]
  %v643 = vld [vmem:[%s626 + $0x80] sm:$0xff]
  %v644 = vld [vmem:[%s626 + $0x88] sm:$0xff]
  %v645 = vld [vmem:[%s626 + $0x90] sm:$0xff]
  %v646 = vld [vmem:[%s626 + $0x98] sm:$0xff]
  %v647 = vld [vmem:[%s626 + $0xa0] sm:$0xff]
  %v648 = vld [vmem:[%s626 + $0xa8] sm:$0xff]
  %v649 = vld [vmem:[%s626 + $0xb0] sm:$0xff]
  %v650 = vld [vmem:[%s626 + $0xb8] sm:$0xff]
  %v651 = vld [vmem:[%s626 + $0xc0] sm:$0xff]
  %v652 = vld [vmem:[%s626 + $0xc8] sm:$0xff]
  %v653 = vld [vmem:[%s626 + $0xd0] sm:$0xff]
  %v654 = vld [vmem:[%s626 + $0xd8] sm:$0xff]
  %v655 = vld [vmem:[%s626 + $0xe0] sm:$0xff]
  %v656 = vld [vmem:[%s626 + $0xe8] sm:$0xff]
  %v657 = vld [vmem:[%s626 + $0xf0] sm:$0xff]
  %v658 = vld [vmem:[%s626 + $0xf8] sm:$0xff]
  %v659 = vld [vmem:[%s626 + $0x100] sm:$0xff]
  %v660 = vld [vmem:[%s626 + $0x108] sm:$0xff]
  %v661 = vld [vmem:[%s626 + $0x110] sm:$0xff]
  %v662 = vld [vmem:[%s626 + $0x118] sm:$0xff]
  %v663 = vld [vmem:[%s626 + $0x120] sm:$0x7]
  %v664 = vld [vmem:[%s626 + $0x128] sm:$0x7]
  %v665 = vld [vmem:[%s626 + $0x130] sm:$0x7]
  %v666 = vld [vmem:[%s626 + $0x138] sm:$0x7]
  %v668 = vsel %vm65, %v663, 0
  %v671 = vsel %vm65, %v664, 0
  %v674 = vsel %vm65, %v665, 0
  %v677 = vsel %vm65, %v666, 0
  %679 = vmatprep.subr.mxu0 %v628
  %680 = vmatpush1.msra.mxu0 %v627
  %681 = vmatprep.subr.mxu0 %v632
  %682 = vmatpush1.msra.mxu0 %v631
  %683 = vmatprep.subr.mxu0 %v636
  %684 = vmatpush1.msra.mxu0 %v635
  %685 = vmatprep.subr.mxu0 %v640
  %686 = vmatpush1.msra.mxu0 %v639
  %687 = vmatprep.subr.mxu0 %v644
  %688 = vmatpush1.msra.mxu0 %v643
  %689 = vmatprep.subr.mxu0 %v648
  %690 = vmatpush1.msra.mxu0 %v647
  %691 = vmatprep.subr.mxu0 %v652
  %692 = vmatpush1.msra.mxu0 %v651
  %693 = vmatprep.subr.mxu0 %v656
  %694 = vmatpush1.msra.mxu0 %v655
  %695 = vmatprep.subr.mxu0 %v660
  %696 = vmatpush1.msra.mxu0 %v659
  %697 = vmatprep.subr.mxu0 %v671
  %698 = vmatpush1.msra.mxu0 %v668
  %699 = vmatprep.subr.mxu0 0.0
  %700 = vmatpush1.msra.mxu0 0.0
  %701 = vmatprep.subr.mxu0 0.0
  %702 = vmatpush1.msra.mxu0 0.0
  %703 = vmatprep.subr.mxu0 0.0
  %704 = vmatpush1.msra.mxu0 0.0
  %705 = vmatprep.subr.mxu0 0.0
  %706 = vmatpush1.msra.mxu0 0.0
  %707 = vmatprep.subr.mxu0 0.0
  %708 = vmatpush1.msra.mxu0 0.0
  %709 = vmatprep.subr.mxu0 0.0
  %710 = vmatpush1.msra.mxu0 0.0
  %711 = vmatprep.subr.mxu0 0.0
  %712 = vmatpush1.msra.mxu0 0.0
  %713 = vmatprep.subr.mxu0 0.0
  %714 = vmatpush1.msra.mxu0 0.0
  %715 = vmatprep.subr.mxu0 0.0
  %716 = vmatpush1.msra.mxu0 0.0
  %717 = vmatprep.subr.mxu0 0.0
  %718 = vmatpush1.msra.mxu0 0.0
  %719 = vmatprep.subr.mxu0 0.0
  %720 = vmatpush1.msra.mxu0 0.0
  %721 = vmatprep.subr.mxu0 0.0
  %722 = vmatpush1.msra.mxu0 0.0
  %723 = vmatprep.subr.mxu0 0.0
  %724 = vmatpush1.msra.mxu0 0.0
  %725 = vmatprep.subr.mxu0 0.0
  %726 = vmatpush1.msra.mxu0 0.0
  %727 = vmatprep.subr.mxu0 0.0
  %728 = vmatpush1.msra.mxu0 0.0
  %729 = vmatprep.subr.mxu0 0.0
  %730 = vmatpush1.msra.mxu0 0.0
  %731 = vmatprep.subr.mxu0 0.0
  %732 = vmatpush1.msra.mxu0 0.0
  %733 = vmatprep.subr.mxu0 0.0
  %734 = vmatpush1.msra.mxu0 0.0
  %735 = vmatprep.subr.mxu0 0.0
  %736 = vmatpush1.msra.mxu0 0.0
  %737 = vmatprep.subr.mxu0 0.0
  %738 = vmatpush1.msra.mxu0 0.0
  %739 = vmatprep.subr.mxu0 0.0
  %740 = vmatpush1.msra.mxu0 0.0
  %741 = vmatprep.subr.mxu0 0.0
  %742 = vmatpush1.msra.mxu0 0.0
  %743 = vmatprep.mubr.f32.mxu0 0.0
  %744 = vmatmul.mubr.f32.gmra.mrb[0].mxu0 %v63
  %v745 = vpop.f32.mrb[0].mxu0
  %v746 = vadd.f32 %v59, %v745
  %v747 = vpop.f32.mrb[0].mxu0
  %v748 = vadd.f32 %v59, %v747
  %749 = vdwg.mxu0
  %750 = vmatprep.subr.mxu0 %v630
  %751 = vmatpush1.msra.mxu0 %v629
  %752 = vmatprep.subr.mxu0 %v634
  %753 = vmatpush1.msra.mxu0 %v633
  %754 = vmatprep.subr.mxu0 %v638
  %755 = vmatpush1.msra.mxu0 %v637
  %756 = vmatprep.subr.mxu0 %v642
  %757 = vmatpush1.msra.mxu0 %v641
  %758 = vmatprep.subr.mxu0 %v646
  %759 = vmatpush1.msra.mxu0 %v645
  %760 = vmatprep.subr.mxu0 %v650
  %761 = vmatpush1.msra.mxu0 %v649
  %762 = vmatprep.subr.mxu0 %v654
  %763 = vmatpush1.msra.mxu0 %v653
  %764 = vmatprep.subr.mxu0 %v658
  %765 = vmatpush1.msra.mxu0 %v657
  %766 = vmatprep.subr.mxu0 %v662
  %767 = vmatpush1.msra.mxu0 %v661
  %768 = vmatprep.subr.mxu0 %v677
  %769 = vmatpush1.msra.mxu0 %v674
  %770 = vmatprep.subr.mxu0 0.0
  %771 = vmatpush1.msra.mxu0 0.0
  %772 = vmatprep.subr.mxu0 0.0
  %773 = vmatpush1.msra.mxu0 0.0
  %774 = vmatprep.subr.mxu0 0.0
  %775 = vmatpush1.msra.mxu0 0.0
  %776 = vmatprep.subr.mxu0 0.0
  %777 = vmatpush1.msra.mxu0 0.0
  %778 = vmatprep.subr.mxu0 0.0
  %779 = vmatpush1.msra.mxu0 0.0
  %780 = vmatprep.subr.mxu0 0.0
  %781 = vmatpush1.msra.mxu0 0.0
  %782 = vmatprep.subr.mxu0 0.0
  %783 = vmatpush1.msra.mxu0 0.0
  %784 = vmatprep.subr.mxu0 0.0
  %785 = vmatpush1.msra.mxu0 0.0
  %786 = vmatprep.subr.mxu0 0.0
  %787 = vmatpush1.msra.mxu0 0.0
  %788 = vmatprep.subr.mxu0 0.0
  %789 = vmatpush1.msra.mxu0 0.0
  %790 = vmatprep.subr.mxu0 0.0
  %791 = vmatpush1.msra.mxu0 0.0
  %792 = vmatprep.subr.mxu0 0.0
  %793 = vmatpush1.msra.mxu0 0.0
  %794 = vmatprep.subr.mxu0 0.0
  %795 = vmatpush1.msra.mxu0 0.0
  %796 = vmatprep.subr.mxu0 0.0
  %797 = vmatpush1.msra.mxu0 0.0
  %798 = vmatprep.subr.mxu0 0.0
  %799 = vmatpush1.msra.mxu0 0.0
  %800 = vmatprep.subr.mxu0 0.0
  %801 = vmatpush1.msra.mxu0 0.0
  %802 = vmatprep.subr.mxu0 0.0
  %803 = vmatpush1.msra.mxu0 0.0
  %804 = vmatprep.subr.mxu0 0.0
  %805 = vmatpush1.msra.mxu0 0.0
  %806 = vmatprep.subr.mxu0 0.0
  %807 = vmatpush1.msra.mxu0 0.0
  %808 = vmatprep.subr.mxu0 0.0
  %809 = vmatpush1.msra.mxu0 0.0
  %810 = vmatprep.subr.mxu0 0.0
  %811 = vmatpush1.msra.mxu0 0.0
  %812 = vmatprep.subr.mxu0 0.0
  %813 = vmatpush1.msra.mxu0 0.0
  %814 = vmatprep.mubr.f32.mxu0 0.0
  %815 = vmatmul.mubr.f32.gmra.mrb[0].mxu0 %v63
  %v816 = vpop.f32.mrb[0].mxu0
  %v817 = vadd.f32 %v59, %v816
  %v818 = vpop.f32.mrb[0].mxu0
  %v819 = vadd.f32 %v59, %v818
  %820 = vdwg.mxu0
  %v821 = vmax.f32 %v746, 0.0
  %v822 = vmax.f32 %v748, 0.0
  %v823 = vmax.f32 %v817, 0.0
  %v824 = vmax.f32 %v819, 0.0
  %v825 = vmax.f32 %v622, %v821
  %v826 = vmax.f32 %v623, %v822
  %v827 = vmax.f32 %v624, %v823
  %v828 = vmax.f32 %v625, %v824
  %v829 = vmax.f32 %v423, %v825
  %v830 = vmax.f32 %v424, %v826
  %v831 = vmax.f32 %v425, %v827
  %v832 = vmax.f32 %v426, %v828
  %833 = vst [vmem:[%s3] sm:$0x3f] %v829
  %834 = vst [vmem:[%s3 + $0x8] sm:$0x3f] %v830
  %835 = vst [vmem:[%s3 + $0x10] sm:$0x3f] %v831
  %vm836 = vcmask 62464
  %837 = vst.msk [vmem:[%s3 + $0x18] sm:$0x3f] %vm836, %v832
  // Predicated region
  $region14: #{net_forward.3} parent=0 // pred_check
    _
  $region15: #{net_forward.3} parent=0 // pred_check_branch
    %839 = sbr.rel (0) target = $region17
  $region16: #{net_forward.3} parent=0 // pred_region
    _
  $region17: #{net_forward.3} parent=0 // pred_fallthru
    _
  // Predicated region
  $region18: #{net_forward.3} parent=0 // pred_check
    _
  $region19: #{net_forward.3} parent=0 // pred_check_branch
    %841 = sbr.rel (0) target = $region21
  $region20: #{net_forward.3} parent=0 // pred_region
    _
  $region21: #{net_forward.3} parent=0 // pred_fallthru
    _

// kernel: net_forward.4
$region0: #{net_forward.4}
  #allocation0 [shape = 'u32[]', space=smem, size = 0x4, offset = 0x4, fixed_abs, tag = 'smem constant byte address 0x4 - core index']
  #allocation1 [shape = 'u32[144,128]{1,0:T(1,128)}', space=vmem, size = 0x12000, scoped, tag = 'internal scratch']
  %s0 = inlined_call_operand.vmem [shape: f32[4,150,50], index: 0, kind: input, shape index: {}]
  %s1 = inlined_call_operand.vmem [shape: f32[16,150], index: 1, kind: input, shape index: {}]
  %s2 = inlined_call_operand.vmem [shape: f32[16,1], index: 2, kind: input, shape index: {}]
  %s3 = inlined_call_operand.vmem [shape: f32[16,50], index: 3, kind: output, shape index: {}]
  %s4 = sld [smem:[#allocation0]]
  $region22: #{net_forward.4} parent=0
    _
  %s6 = ssub.s32 1, %s4
  %s7 = scalar_select 0, %s6, %s4
  // Predicated region
  $region2: #{net_forward.4} parent=0 // pred_check
    _
  $region3: #{net_forward.4} parent=0 // pred_check_branch
    %9 = sbr.rel (0) target = $region5
  $region4: #{net_forward.4} parent=0 // pred_region
    _
  $region5: #{net_forward.4} parent=0 // pred_fallthru
    _
  // Predicated region
  $region6: #{net_forward.4} parent=0 // pred_check
    _
  $region7: #{net_forward.4} parent=0 // pred_check_branch
    %11 = sbr.rel (0) target = $region9
  $region8: #{net_forward.4} parent=0 // pred_region
    _
  $region9: #{net_forward.4} parent=0 // pred_fallthru
    _
  // Predicated region
  $region10: #{net_forward.4} parent=0 // pred_check
    _
  $region11: #{net_forward.4} parent=0 // pred_check_branch
    %13 = sbr.rel (0) target = $region13
  $region12: #{net_forward.4} parent=0 // pred_region
    _
  $region13: #{net_forward.4} parent=0 // pred_fallthru
    _
  %v14 = vld [vmem:[%s1] sm:$0xff]
  %v15 = vld [vmem:[%s1 + $0x8] sm:$0xff]
  %v16 = vld [vmem:[%s1 + $0x10] sm:$0xff]
  %v17 = vld [vmem:[%s1 + $0x18] sm:$0xff]
  %v18 = vld [vmem:[%s2] sm:$0xff]
  %v19 = vld [vmem:[%s2 + $0x8] sm:$0xff]
  %v20 = vld [vmem:[%s0] sm:$0xff]
  %v21 = vld [vmem:[%s0 + $0x8] sm:$0xff]
  %v22 = vld [vmem:[%s0 + $0x10] sm:$0xff]
  %v23 = vld [vmem:[%s0 + $0x18] sm:$0xff]
  %v24 = vld [vmem:[%s0 + $0x20] sm:$0xff]
  %v25 = vld [vmem:[%s0 + $0x28] sm:$0xff]
  %v26 = vld [vmem:[%s0 + $0x30] sm:$0xff]
  %v27 = vld [vmem:[%s0 + $0x38] sm:$0xff]
  %v28 = vld [vmem:[%s0 + $0x40] sm:$0xff]
  %v29 = vld [vmem:[%s0 + $0x48] sm:$0xff]
  %v30 = vld [vmem:[%s0 + $0x50] sm:$0xff]
  %v31 = vld [vmem:[%s0 + $0x58] sm:$0xff]
  %v32 = vld [vmem:[%s0 + $0x60] sm:$0xff]
  %v33 = vld [vmem:[%s0 + $0x68] sm:$0xff]
  %v34 = vld [vmem:[%s0 + $0x70] sm:$0xff]
  %v35 = vld [vmem:[%s0 + $0x78] sm:$0xff]
  %v36 = vld [vmem:[%s0 + $0x80] sm:$0xff]
  %v37 = vld [vmem:[%s0 + $0x88] sm:$0xff]
  %v38 = vld [vmem:[%s0 + $0x90] sm:$0x3f]
  %40 = vset.pattern.permute.xlu0 0
  %41 = vperm.xlu0 %40, %v18
  %v42 = vpop.permute.xlu0 %41
  %45 = vset.pattern.permute.xlu0 0
  %46 = vperm.xlu0 %45, %v19
  %v47 = vpop.permute.xlu0 %46
  %vm49 = vcmask 179200
  %v51 = vsel %vm49, %v15, 0
  %v54 = vsel %vm49, %v17, 0
  %vm56 = vcmask 1045504
  %v58 = vsel %vm56, %v38, 0
  %60 = vmatprep.subr.mxu0 0.0
  %61 = vmatpush1.msra.mxu0 %v20
  %62 = vmatprep.subr.mxu0 0.0
  %63 = vmatpush1.msra.mxu0 %v21
  %64 = vmatprep.subr.mxu0 0.0
  %65 = vmatpush1.msra.mxu0 %v22
  %66 = vmatprep.subr.mxu0 0.0
  %67 = vmatpush1.msra.mxu0 %v23
  %68 = vmatprep.subr.mxu0 0.0
  %69 = vmatpush1.msra.mxu0 %v24
  %70 = vmatprep.subr.mxu0 0.0
  %71 = vmatpush1.msra.mxu0 %v25
  %72 = vmatprep.subr.mxu0 0.0
  %73 = vmatpush1.msra.mxu0 %v26
  %74 = vmatprep.subr.mxu0 0.0
  %75 = vmatpush1.msra.mxu0 %v27
  %76 = vmatprep.subr.mxu0 0.0
  %77 = vmatpush1.msra.mxu0 %v28
  %78 = vmatprep.subr.mxu0 0.0
  %79 = vmatpush1.msra.mxu0 %v29
  %80 = vmatprep.subr.mxu0 0.0
  %81 = vmatpush1.msra.mxu0 %v30
  %82 = vmatprep.subr.mxu0 0.0
  %83 = vmatpush1.msra.mxu0 %v31
  %84 = vmatprep.subr.mxu0 0.0
  %85 = vmatpush1.msra.mxu0 %v32
  %86 = vmatprep.subr.mxu0 0.0
  %87 = vmatpush1.msra.mxu0 %v33
  %88 = vmatprep.subr.mxu0 0.0
  %89 = vmatpush1.msra.mxu0 %v34
  %90 = vmatprep.subr.mxu0 0.0
  %91 = vmatpush1.msra.mxu0 %v35
  %92 = vmatprep.subr.mxu0 0.0
  %93 = vmatpush1.msra.mxu0 %v36
  %94 = vmatprep.subr.mxu0 0.0
  %95 = vmatpush1.msra.mxu0 %v37
  %96 = vmatprep.subr.mxu0 0.0
  %97 = vmatpush1.msra.mxu0 %v58
  %98 = vmatprep.subr.mxu0 0.0
  %99 = vmatpush1.msra.mxu0 0.0
  %100 = vmatprep.subr.mxu0 0.0
  %101 = vmatpush1.msra.mxu0 0.0
  %102 = vmatprep.subr.mxu0 0.0
  %103 = vmatpush1.msra.mxu0 0.0
  %104 = vmatprep.subr.mxu0 0.0
  %105 = vmatpush1.msra.mxu0 0.0
  %106 = vmatprep.subr.mxu0 0.0
  %107 = vmatpush1.msra.mxu0 0.0
  %108 = vmatprep.subr.mxu0 0.0
  %109 = vmatpush1.msra.mxu0 0.0
  %110 = vmatprep.subr.mxu0 0.0
  %111 = vmatpush1.msra.mxu0 0.0
  %112 = vmatprep.subr.mxu0 0.0
  %113 = vmatpush1.msra.mxu0 0.0
  %114 = vmatprep.subr.mxu0 0.0
  %115 = vmatpush1.msra.mxu0 0.0
  %116 = vmatprep.subr.mxu0 0.0
  %117 = vmatpush1.msra.mxu0 0.0
  %118 = vmatprep.subr.mxu0 0.0
  %119 = vmatpush1.msra.mxu0 0.0
  %120 = vmatprep.subr.mxu0 0.0
  %121 = vmatpush1.msra.mxu0 0.0
  %122 = vmatprep.subr.mxu0 0.0
  %123 = vmatpush1.msra.mxu0 0.0
  %124 = vmatprep.mubr.f32.mxu0 %v51
  %125 = vmatmul.mubr.f32.gmra.mrb[0].mxu0 %v14
  %v126 = vpop.f32.mrb[0].mxu0
  %v127 = vadd.f32 %v42, %v126
  %v128 = vpop.f32.mrb[0].mxu0
  %129 = vmatprep.mubr.f32.mxu0 %v54
  %130 = vmatmul.mubr.f32.gmra.mrb[0].mxu0 %v16
  %v131 = vpop.f32.mrb[0].mxu0
  %v132 = vadd.f32 %v47, %v131
  %v133 = vpop.f32.mrb[0].mxu0
  %134 = vdwg.mxu0
  %v135 = vmax.f32 %v127, 0.0
  %v136 = vmax.f32 %v132, 0.0
  %s137 = scalar_lea.vmem %s0, 152
  %v138 = vld [vmem:[%s137] sm:$0xff]
  %v139 = vld [vmem:[%s137 + $0x8] sm:$0xff]
  %v140 = vld [vmem:[%s137 + $0x10] sm:$0xff]
  %v141 = vld [vmem:[%s137 + $0x18] sm:$0xff]
  %v142 = vld [vmem:[%s137 + $0x20] sm:$0xff]
  %v143 = vld [vmem:[%s137 + $0x28] sm:$0xff]
  %v144 = vld [vmem:[%s137 + $0x30] sm:$0xff]
  %v145 = vld [vmem:[%s137 + $0x38] sm:$0xff]
  %v146 = vld [vmem:[%s137 + $0x40] sm:$0xff]
  %v147 = vld [vmem:[%s137 + $0x48] sm:$0xff]
  %v148 = vld [vmem:[%s137 + $0x50] sm:$0xff]
  %v149 = vld [vmem:[%s137 + $0x58] sm:$0xff]
  %v150 = vld [vmem:[%s137 + $0x60] sm:$0xff]
  %v151 = vld [vmem:[%s137 + $0x68] sm:$0xff]
  %v152 = vld [vmem:[%s137 + $0x70] sm:$0xff]
  %v153 = vld [vmem:[%s137 + $0x78] sm:$0xff]
  %v154 = vld [vmem:[%s137 + $0x80] sm:$0xff]
  %v155 = vld [vmem:[%s137 + $0x88] sm:$0xff]
  %v156 = vld [vmem:[%s137 + $0x90] sm:$0x3f]
  %v158 = vsel %vm56, %v156, 0
  %160 = vmatprep.subr.mxu0 0.0
  %161 = vmatpush1.msra.mxu0 %v138
  %162 = vmatprep.subr.mxu0 0.0
  %163 = vmatpush1.msra.mxu0 %v139
  %164 = vmatprep.subr.mxu0 0.0
  %165 = vmatpush1.msra.mxu0 %v140
  %166 = vmatprep.subr.mxu0 0.0
  %167 = vmatpush1.msra.mxu0 %v141
  %168 = vmatprep.subr.mxu0 0.0
  %169 = vmatpush1.msra.mxu0 %v142
  %170 = vmatprep.subr.mxu0 0.0
  %171 = vmatpush1.msra.mxu0 %v143
  %172 = vmatprep.subr.mxu0 0.0
  %173 = vmatpush1.msra.mxu0 %v144
  %174 = vmatprep.subr.mxu0 0.0
  %175 = vmatpush1.msra.mxu0 %v145
  %176 = vmatprep.subr.mxu0 0.0
  %177 = vmatpush1.msra.mxu0 %v146
  %178 = vmatprep.subr.mxu0 0.0
  %179 = vmatpush1.msra.mxu0 %v147
  %180 = vmatprep.subr.mxu0 0.0
  %181 = vmatpush1.msra.mxu0 %v148
  %182 = vmatprep.subr.mxu0 0.0
  %183 = vmatpush1.msra.mxu0 %v149
  %184 = vmatprep.subr.mxu0 0.0
  %185 = vmatpush1.msra.mxu0 %v150
  %186 = vmatprep.subr.mxu0 0.0
  %187 = vmatpush1.msra.mxu0 %v151
  %188 = vmatprep.subr.mxu0 0.0
  %189 = vmatpush1.msra.mxu0 %v152
  %190 = vmatprep.subr.mxu0 0.0
  %191 = vmatpush1.msra.mxu0 %v153
  %192 = vmatprep.subr.mxu0 0.0
  %193 = vmatpush1.msra.mxu0 %v154
  %194 = vmatprep.subr.mxu0 0.0
  %195 = vmatpush1.msra.mxu0 %v155
  %196 = vmatprep.subr.mxu0 0.0
  %197 = vmatpush1.msra.mxu0 %v158
  %198 = vmatprep.subr.mxu0 0.0
  %199 = vmatpush1.msra.mxu0 0.0
  %200 = vmatprep.subr.mxu0 0.0
  %201 = vmatpush1.msra.mxu0 0.0
  %202 = vmatprep.subr.mxu0 0.0
  %203 = vmatpush1.msra.mxu0 0.0
  %204 = vmatprep.subr.mxu0 0.0
  %205 = vmatpush1.msra.mxu0 0.0
  %206 = vmatprep.subr.mxu0 0.0
  %207 = vmatpush1.msra.mxu0 0.0
  %208 = vmatprep.subr.mxu0 0.0
  %209 = vmatpush1.msra.mxu0 0.0
  %210 = vmatprep.subr.mxu0 0.0
  %211 = vmatpush1.msra.mxu0 0.0
  %212 = vmatprep.subr.mxu0 0.0
  %213 = vmatpush1.msra.mxu0 0.0
  %214 = vmatprep.subr.mxu0 0.0
  %215 = vmatpush1.msra.mxu0 0.0
  %216 = vmatprep.subr.mxu0 0.0
  %217 = vmatpush1.msra.mxu0 0.0
  %218 = vmatprep.subr.mxu0 0.0
  %219 = vmatpush1.msra.mxu0 0.0
  %220 = vmatprep.subr.mxu0 0.0
  %221 = vmatpush1.msra.mxu0 0.0
  %222 = vmatprep.subr.mxu0 0.0
  %223 = vmatpush1.msra.mxu0 0.0
  %224 = vmatprep.mubr.f32.mxu0 %v51
  %225 = vmatmul.mubr.f32.gmra.mrb[0].mxu0 %v14
  %v226 = vpop.f32.mrb[0].mxu0
  %v227 = vadd.f32 %v42, %v226
  %v228 = vpop.f32.mrb[0].mxu0
  %229 = vmatprep.mubr.f32.mxu0 %v54
  %230 = vmatmul.mubr.f32.gmra.mrb[0].mxu0 %v16
  %v231 = vpop.f32.mrb[0].mxu0
  %v232 = vadd.f32 %v47, %v231
  %v233 = vpop.f32.mrb[0].mxu0
  %234 = vdwg.mxu0
  %v235 = vmax.f32 %v227, 0.0
  %v236 = vmax.f32 %v232, 0.0
  %v237 = vmax.f32 %v135, %v235
  %v238 = vmax.f32 %v136, %v236
  %s239 = scalar_lea.vmem %s0, 304
  %v240 = vld [vmem:[%s239] sm:$0xff]
  %v241 = vld [vmem:[%s239 + $0x8] sm:$0xff]
  %v242 = vld [vmem:[%s239 + $0x10] sm:$0xff]
  %v243 = vld [vmem:[%s239 + $0x18] sm:$0xff]
  %v244 = vld [vmem:[%s239 + $0x20] sm:$0xff]
  %v245 = vld [vmem:[%s239 + $0x28] sm:$0xff]
  %v246 = vld [vmem:[%s239 + $0x30] sm:$0xff]
  %v247 = vld [vmem:[%s239 + $0x38] sm:$0xff]
  %v248 = vld [vmem:[%s239 + $0x40] sm:$0xff]
  %v249 = vld [vmem:[%s239 + $0x48] sm:$0xff]
  %v250 = vld [vmem:[%s239 + $0x50] sm:$0xff]
  %v251 = vld [vmem:[%s239 + $0x58] sm:$0xff]
  %v252 = vld [vmem:[%s239 + $0x60] sm:$0xff]
  %v253 = vld [vmem:[%s239 + $0x68] sm:$0xff]
  %v254 = vld [vmem:[%s239 + $0x70] sm:$0xff]
  %v255 = vld [vmem:[%s239 + $0x78] sm:$0xff]
  %v256 = vld [vmem:[%s239 + $0x80] sm:$0xff]
  %v257 = vld [vmem:[%s239 + $0x88] sm:$0xff]
  %v258 = vld [vmem:[%s239 + $0x90] sm:$0x3f]
  %v260 = vsel %vm56, %v258, 0
  %262 = vmatprep.subr.mxu0 0.0
  %263 = vmatpush1.msra.mxu0 %v240
  %264 = vmatprep.subr.mxu0 0.0
  %265 = vmatpush1.msra.mxu0 %v241
  %266 = vmatprep.subr.mxu0 0.0
  %267 = vmatpush1.msra.mxu0 %v242
  %268 = vmatprep.subr.mxu0 0.0
  %269 = vmatpush1.msra.mxu0 %v243
  %270 = vmatprep.subr.mxu0 0.0
  %271 = vmatpush1.msra.mxu0 %v244
  %272 = vmatprep.subr.mxu0 0.0
  %273 = vmatpush1.msra.mxu0 %v245
  %274 = vmatprep.subr.mxu0 0.0
  %275 = vmatpush1.msra.mxu0 %v246
  %276 = vmatprep.subr.mxu0 0.0
  %277 = vmatpush1.msra.mxu0 %v247
  %278 = vmatprep.subr.mxu0 0.0
  %279 = vmatpush1.msra.mxu0 %v248
  %280 = vmatprep.subr.mxu0 0.0
  %281 = vmatpush1.msra.mxu0 %v249
  %282 = vmatprep.subr.mxu0 0.0
  %283 = vmatpush1.msra.mxu0 %v250
  %284 = vmatprep.subr.mxu0 0.0
  %285 = vmatpush1.msra.mxu0 %v251
  %286 = vmatprep.subr.mxu0 0.0
  %287 = vmatpush1.msra.mxu0 %v252
  %288 = vmatprep.subr.mxu0 0.0
  %289 = vmatpush1.msra.mxu0 %v253
  %290 = vmatprep.subr.mxu0 0.0
  %291 = vmatpush1.msra.mxu0 %v254
  %292 = vmatprep.subr.mxu0 0.0
  %293 = vmatpush1.msra.mxu0 %v255
  %294 = vmatprep.subr.mxu0 0.0
  %295 = vmatpush1.msra.mxu0 %v256
  %296 = vmatprep.subr.mxu0 0.0
  %297 = vmatpush1.msra.mxu0 %v257
  %298 = vmatprep.subr.mxu0 0.0
  %299 = vmatpush1.msra.mxu0 %v260
  %300 = vmatprep.subr.mxu0 0.0
  %301 = vmatpush1.msra.mxu0 0.0
  %302 = vmatprep.subr.mxu0 0.0
  %303 = vmatpush1.msra.mxu0 0.0
  %304 = vmatprep.subr.mxu0 0.0
  %305 = vmatpush1.msra.mxu0 0.0
  %306 = vmatprep.subr.mxu0 0.0
  %307 = vmatpush1.msra.mxu0 0.0
  %308 = vmatprep.subr.mxu0 0.0
  %309 = vmatpush1.msra.mxu0 0.0
  %310 = vmatprep.subr.mxu0 0.0
  %311 = vmatpush1.msra.mxu0 0.0
  %312 = vmatprep.subr.mxu0 0.0
  %313 = vmatpush1.msra.mxu0 0.0
  %314 = vmatprep.subr.mxu0 0.0
  %315 = vmatpush1.msra.mxu0 0.0
  %316 = vmatprep.subr.mxu0 0.0
  %317 = vmatpush1.msra.mxu0 0.0
  %318 = vmatprep.subr.mxu0 0.0
  %319 = vmatpush1.msra.mxu0 0.0
  %320 = vmatprep.subr.mxu0 0.0
  %321 = vmatpush1.msra.mxu0 0.0
  %322 = vmatprep.subr.mxu0 0.0
  %323 = vmatpush1.msra.mxu0 0.0
  %324 = vmatprep.subr.mxu0 0.0
  %325 = vmatpush1.msra.mxu0 0.0
  %326 = vmatprep.mubr.f32.mxu0 %v51
  %327 = vmatmul.mubr.f32.gmra.mrb[0].mxu0 %v14
  %v328 = vpop.f32.mrb[0].mxu0
  %v329 = vadd.f32 %v42, %v328
  %v330 = vpop.f32.mrb[0].mxu0
  %331 = vmatprep.mubr.f32.mxu0 %v54
  %332 = vmatmul.mubr.f32.gmra.mrb[0].mxu0 %v16
  %v333 = vpop.f32.mrb[0].mxu0
  %v334 = vadd.f32 %v47, %v333
  %v335 = vpop.f32.mrb[0].mxu0
  %336 = vdwg.mxu0
  %v337 = vmax.f32 %v329, 0.0
  %v338 = vmax.f32 %v334, 0.0
  %s339 = scalar_lea.vmem %s0, 456
  %v340 = vld [vmem:[%s339] sm:$0xff]
  %v341 = vld [vmem:[%s339 + $0x8] sm:$0xff]
  %v342 = vld [vmem:[%s339 + $0x10] sm:$0xff]
  %v343 = vld [vmem:[%s339 + $0x18] sm:$0xff]
  %v344 = vld [vmem:[%s339 + $0x20] sm:$0xff]
  %v345 = vld [vmem:[%s339 + $0x28] sm:$0xff]
  %v346 = vld [vmem:[%s339 + $0x30] sm:$0xff]
  %v347 = vld [vmem:[%s339 + $0x38] sm:$0xff]
  %v348 = vld [vmem:[%s339 + $0x40] sm:$0xff]
  %v349 = vld [vmem:[%s339 + $0x48] sm:$0xff]
  %v350 = vld [vmem:[%s339 + $0x50] sm:$0xff]
  %v351 = vld [vmem:[%s339 + $0x58] sm:$0xff]
  %v352 = vld [vmem:[%s339 + $0x60] sm:$0xff]
  %v353 = vld [vmem:[%s339 + $0x68] sm:$0xff]
  %v354 = vld [vmem:[%s339 + $0x70] sm:$0xff]
  %v355 = vld [vmem:[%s339 + $0x78] sm:$0xff]
  %v356 = vld [vmem:[%s339 + $0x80] sm:$0xff]
  %v357 = vld [vmem:[%s339 + $0x88] sm:$0xff]
  %v358 = vld [vmem:[%s339 + $0x90] sm:$0x3f]
  %v360 = vsel %vm56, %v358, 0
  %362 = vmatprep.subr.mxu0 0.0
  %363 = vmatpush1.msra.mxu0 %v340
  %364 = vmatprep.subr.mxu0 0.0
  %365 = vmatpush1.msra.mxu0 %v341
  %366 = vmatprep.subr.mxu0 0.0
  %367 = vmatpush1.msra.mxu0 %v342
  %368 = vmatprep.subr.mxu0 0.0
  %369 = vmatpush1.msra.mxu0 %v343
  %370 = vmatprep.subr.mxu0 0.0
  %371 = vmatpush1.msra.mxu0 %v344
  %372 = vmatprep.subr.mxu0 0.0
  %373 = vmatpush1.msra.mxu0 %v345
  %374 = vmatprep.subr.mxu0 0.0
  %375 = vmatpush1.msra.mxu0 %v346
  %376 = vmatprep.subr.mxu0 0.0
  %377 = vmatpush1.msra.mxu0 %v347
  %378 = vmatprep.subr.mxu0 0.0
  %379 = vmatpush1.msra.mxu0 %v348
  %380 = vmatprep.subr.mxu0 0.0
  %381 = vmatpush1.msra.mxu0 %v349
  %382 = vmatprep.subr.mxu0 0.0
  %383 = vmatpush1.msra.mxu0 %v350
  %384 = vmatprep.subr.mxu0 0.0
  %385 = vmatpush1.msra.mxu0 %v351
  %386 = vmatprep.subr.mxu0 0.0
  %387 = vmatpush1.msra.mxu0 %v352
  %388 = vmatprep.subr.mxu0 0.0
  %389 = vmatpush1.msra.mxu0 %v353
  %390 = vmatprep.subr.mxu0 0.0
  %391 = vmatpush1.msra.mxu0 %v354
  %392 = vmatprep.subr.mxu0 0.0
  %393 = vmatpush1.msra.mxu0 %v355
  %394 = vmatprep.subr.mxu0 0.0
  %395 = vmatpush1.msra.mxu0 %v356
  %396 = vmatprep.subr.mxu0 0.0
  %397 = vmatpush1.msra.mxu0 %v357
  %398 = vmatprep.subr.mxu0 0.0
  %399 = vmatpush1.msra.mxu0 %v360
  %400 = vmatprep.subr.mxu0 0.0
  %401 = vmatpush1.msra.mxu0 0.0
  %402 = vmatprep.subr.mxu0 0.0
  %403 = vmatpush1.msra.mxu0 0.0
  %404 = vmatprep.subr.mxu0 0.0
  %405 = vmatpush1.msra.mxu0 0.0
  %406 = vmatprep.subr.mxu0 0.0
  %407 = vmatpush1.msra.mxu0 0.0
  %408 = vmatprep.subr.mxu0 0.0
  %409 = vmatpush1.msra.mxu0 0.0
  %410 = vmatprep.subr.mxu0 0.0
  %411 = vmatpush1.msra.mxu0 0.0
  %412 = vmatprep.subr.mxu0 0.0
  %413 = vmatpush1.msra.mxu0 0.0
  %414 = vmatprep.subr.mxu0 0.0
  %415 = vmatpush1.msra.mxu0 0.0
  %416 = vmatprep.subr.mxu0 0.0
  %417 = vmatpush1.msra.mxu0 0.0
  %418 = vmatprep.subr.mxu0 0.0
  %419 = vmatpush1.msra.mxu0 0.0
  %420 = vmatprep.subr.mxu0 0.0
  %421 = vmatpush1.msra.mxu0 0.0
  %422 = vmatprep.subr.mxu0 0.0
  %423 = vmatpush1.msra.mxu0 0.0
  %424 = vmatprep.subr.mxu0 0.0
  %425 = vmatpush1.msra.mxu0 0.0
  %426 = vmatprep.mubr.f32.mxu0 %v51
  %427 = vmatmul.mubr.f32.gmra.mrb[0].mxu0 %v14
  %v428 = vpop.f32.mrb[0].mxu0
  %v429 = vadd.f32 %v42, %v428
  %v430 = vpop.f32.mrb[0].mxu0
  %431 = vmatprep.mubr.f32.mxu0 %v54
  %432 = vmatmul.mubr.f32.gmra.mrb[0].mxu0 %v16
  %v433 = vpop.f32.mrb[0].mxu0
  %v434 = vadd.f32 %v47, %v433
  %v435 = vpop.f32.mrb[0].mxu0
  %436 = vdwg.mxu0
  %v437 = vmax.f32 %v429, 0.0
  %v438 = vmax.f32 %v434, 0.0
  %v439 = vmax.f32 %v337, %v437
  %v440 = vmax.f32 %v338, %v438
  %v441 = vmax.f32 %v237, %v439
  %v442 = vmax.f32 %v238, %v440
  %vm443 = vcmask 408576
  %444 = vst.msk [vmem:[%s3] sm:$0xff] %vm443, %v441
  %445 = vst.msk [vmem:[%s3 + $0x8] sm:$0xff] %vm443, %v442
  // Predicated region
  $region14: #{net_forward.4} parent=0 // pred_check
    _
  $region15: #{net_forward.4} parent=0 // pred_check_branch
    %447 = sbr.rel (0) target = $region17
  $region16: #{net_forward.4} parent=0 // pred_region
    _
  $region17: #{net_forward.4} parent=0 // pred_fallthru
    _
  // Predicated region
  $region18: #{net_forward.4} parent=0 // pred_check
    _
  $region19: #{net_forward.4} parent=0 // pred_check_branch
    %449 = sbr.rel (0) target = $region21
  $region20: #{net_forward.4} parent=0 // pred_region
    _
  $region21: #{net_forward.4} parent=0 // pred_fallthru
    _

// kernel: net_forward.5
$region0: #{net_forward.5}
  #allocation0 [shape = 'u32[]', space=smem, size = 0x4, offset = 0x4, fixed_abs, tag = 'smem constant byte address 0x4 - core index']
  #allocation1 [shape = 'u32[144,128]{1,0:T(1,128)}', space=vmem, size = 0x12000, scoped, tag = 'internal scratch']
  %s0 = inlined_call_operand.vmem [shape: f32[2,400], index: 0, kind: input, shape index: {}]
  %s1 = inlined_call_operand.vmem [shape: f32[400,128], index: 1, kind: input, shape index: {}]
  %s2 = inlined_call_operand.vmem [shape: f32[1,128], index: 2, kind: input, shape index: {}]
  %s3 = inlined_call_operand.vmem [shape: f32[128,128], index: 3, kind: input, shape index: {}]
  %s4 = inlined_call_operand.vmem [shape: f32[1,128], index: 4, kind: input, shape index: {}]
  %s5 = inlined_call_operand.vmem [shape: f32[128,128], index: 5, kind: input, shape index: {}]
  %s6 = inlined_call_operand.vmem [shape: f32[1,128], index: 6, kind: input, shape index: {}]
  %s7 = inlined_call_operand.hbm [shape: f32[2,128], index: 7, kind: output, shape index: {}]
  %s8 = sld [smem:[#allocation0]]
  $region38: #{net_forward.5} parent=0
    _
  %s10 = ssub.s32 1, %s8
  %s11 = scalar_select 0, %s10, %s8
  $region1: #{net_forward.5} parent=0
    #allocation2 [shape = 'u8[1024]{0}', space=vmem, size = 0x400, scoped, tag = 'output window, operand 0, single buffered']
    #allocation3 [shape = 's32[1]{0}', space=sflag, size = 0x4, scoped, tag = 'scoped memory for net_forward.5']
    %12 = vsyncpa [#allocation3], 0
    // Predicated region
    $region2: #{net_forward.5} parent=1 // pred_check
      _
    $region3: #{net_forward.5} parent=1 // pred_check_branch
      %14 = sbr.rel (0) target = $region5
    $region4: #{net_forward.5} parent=1 // pred_region
      _
    $region5: #{net_forward.5} parent=1 // pred_fallthru
      _
    // Predicated region
    $region6: #{net_forward.5} parent=1 // pred_check
      _
    $region7: #{net_forward.5} parent=1 // pred_check_branch
      %16 = sbr.rel (0) target = $region9
    $region8: #{net_forward.5} parent=1 // pred_region
      _
    $region9: #{net_forward.5} parent=1 // pred_fallthru
      _
    // Predicated region
    $region10: #{net_forward.5} parent=1 // pred_check
      _
    $region11: #{net_forward.5} parent=1 // pred_check_branch
      %18 = sbr.rel (0) target = $region13
    $region12: #{net_forward.5} parent=1 // pred_region
      _
    $region13: #{net_forward.5} parent=1 // pred_fallthru
      _
    // Predicated region
    $region14: #{net_forward.5} parent=1 // pred_check
      _
    $region15: #{net_forward.5} parent=1 // pred_check_branch
      %20 = sbr.rel (0) target = $region17
    $region16: #{net_forward.5} parent=1 // pred_region
      _
    $region17: #{net_forward.5} parent=1 // pred_fallthru
      _
    // Predicated region
    $region18: #{net_forward.5} parent=1 // pred_check
      _
    $region19: #{net_forward.5} parent=1 // pred_check_branch
      %22 = sbr.rel (0) target = $region21
    $region20: #{net_forward.5} parent=1 // pred_region
      _
    $region21: #{net_forward.5} parent=1 // pred_fallthru
      _
    // Predicated region
    $region22: #{net_forward.5} parent=1 // pred_check
      _
    $region23: #{net_forward.5} parent=1 // pred_check_branch
      %24 = sbr.rel (0) target = $region25
    $region24: #{net_forward.5} parent=1 // pred_region
      _
    $region25: #{net_forward.5} parent=1 // pred_fallthru
      _
    // Predicated region
    $region26: #{net_forward.5} parent=1 // pred_check
      _
    $region27: #{net_forward.5} parent=1 // pred_check_branch
      %26 = sbr.rel (0) target = $region29
    $region28: #{net_forward.5} parent=1 // pred_region
      _
    $region29: #{net_forward.5} parent=1 // pred_fallthru
      _
    %v27 = vld [vmem:[%s0] sm:$0xff]
    %v28 = vld [vmem:[%s1] sm:$0xff]
    %v29 = vld [vmem:[%s1 + $0x8] sm:$0xff]
    %v30 = vld [vmem:[%s1 + $0x10] sm:$0xff]
    %v31 = vld [vmem:[%s1 + $0x18] sm:$0xff]
    %v32 = vld [vmem:[%s1 + $0x20] sm:$0xff]
    %v33 = vld [vmem:[%s1 + $0x28] sm:$0xff]
    %v34 = vld [vmem:[%s1 + $0x30] sm:$0xff]
    %v35 = vld [vmem:[%s1 + $0x38] sm:$0xff]
    %v36 = vld [vmem:[%s1 + $0x40] sm:$0xff]
    %v37 = vld [vmem:[%s1 + $0x48] sm:$0xff]
    %v38 = vld [vmem:[%s1 + $0x50] sm:$0xff]
    %v39 = vld [vmem:[%s1 + $0x58] sm:$0xff]
    %v40 = vld [vmem:[%s1 + $0x60] sm:$0xff]
    %v41 = vld [vmem:[%s1 + $0x68] sm:$0xff]
    %v42 = vld [vmem:[%s1 + $0x70] sm:$0xff]
    %v43 = vld [vmem:[%s1 + $0x78] sm:$0xff]
    %v44 = vld [vmem:[%s1 + $0x80] sm:$0xff]
    %v45 = vld [vmem:[%s1 + $0x88] sm:$0xff]
    %v46 = vld [vmem:[%s1 + $0x90] sm:$0xff]
    %v47 = vld [vmem:[%s1 + $0x98] sm:$0xff]
    %v48 = vld [vmem:[%s1 + $0xa0] sm:$0xff]
    %v49 = vld [vmem:[%s1 + $0xa8] sm:$0xff]
    %v50 = vld [vmem:[%s1 + $0xb0] sm:$0xff]
    %v51 = vld [vmem:[%s1 + $0xb8] sm:$0xff]
    %v52 = vld [vmem:[%s1 + $0xc0] sm:$0xff]
    %v53 = vld [vmem:[%s1 + $0xc8] sm:$0xff]
    %v54 = vld [vmem:[%s1 + $0xd0] sm:$0xff]
    %v55 = vld [vmem:[%s1 + $0xd8] sm:$0xff]
    %v56 = vld [vmem:[%s1 + $0xe0] sm:$0xff]
    %v57 = vld [vmem:[%s1 + $0xe8] sm:$0xff]
    %v58 = vld [vmem:[%s1 + $0xf0] sm:$0xff]
    %v59 = vld [vmem:[%s1 + $0xf8] sm:$0xff]
    %v60 = vld [vmem:[%s1 + $0x100] sm:$0xff]
    %v61 = vld [vmem:[%s1 + $0x108] sm:$0xff]
    %v62 = vld [vmem:[%s1 + $0x110] sm:$0xff]
    %v63 = vld [vmem:[%s1 + $0x118] sm:$0xff]
    %v64 = vld [vmem:[%s1 + $0x120] sm:$0xff]
    %v65 = vld [vmem:[%s1 + $0x128] sm:$0xff]
    %v66 = vld [vmem:[%s1 + $0x130] sm:$0xff]
    %v67 = vld [vmem:[%s1 + $0x138] sm:$0xff]
    %v68 = vld [vmem:[%s1 + $0x140] sm:$0xff]
    %v69 = vld [vmem:[%s1 + $0x148] sm:$0xff]
    %v70 = vld [vmem:[%s1 + $0x150] sm:$0xff]
    %v71 = vld [vmem:[%s1 + $0x158] sm:$0xff]
    %v72 = vld [vmem:[%s1 + $0x160] sm:$0xff]
    %v73 = vld [vmem:[%s1 + $0x168] sm:$0xff]
    %v74 = vld [vmem:[%s1 + $0x170] sm:$0xff]
    %v75 = vld [vmem:[%s1 + $0x178] sm:$0xff]
    %v76 = vld [vmem:[%s1 + $0x180] sm:$0xff]
    %v77 = vld [vmem:[%s1 + $0x188] sm:$0xff]
    %v78 = vld [vmem:[%s2] sm:$0x1]
    %v80 = vlaneseq
    %v81 = vshrl.u32 %v80, 7
    %v82 = vsub.s32 0, %v81
    %v83 = vrot.slane %v78, %v82
    %v86 = vcombine.high %v27, %v27
    %v88 = vunpack.c.l.s4 1983009808
    %v89 = vunpack.c.0.s8 %v88
    %v90 = vlaneseq
    %v91 = vshrl.u32 %v90, 7
    %v92 = vsub.s32 %v89, %v91
    %v93 = vrot.slane %v27, %v92
    %v95 = vunpack.c.l.s4 1983009808
    %v96 = vunpack.c.0.s8 %v95
    %v97 = vlaneseq
    %v98 = vshrl.u32 %v97, 7
    %v99 = vsub.s32 %v96, %v98
    %v100 = vrot.slane %v86, %v99
    %v101 = vcombine.high %v93, %v93
    %v102 = vcombine.high %v100, %v100
    %vm106 = vcmask 130048
    %v107 = vsel %vm106, %v102, 0
    %109 = vmatprep.subr.mxu0 0.0
    %110 = vmatpush1.msra.mxu0 %v28
    %111 = vmatprep.subr.mxu0 0.0
    %112 = vmatpush1.msra.mxu0 %v29
    %113 = vmatprep.subr.mxu0 0.0
    %114 = vmatpush1.msra.mxu0 %v30
    %115 = vmatprep.subr.mxu0 0.0
    %116 = vmatpush1.msra.mxu0 %v31
    %117 = vmatprep.subr.mxu0 0.0
    %118 = vmatpush1.msra.mxu0 %v32
    %119 = vmatprep.subr.mxu0 0.0
    %120 = vmatpush1.msra.mxu0 %v33
    %121 = vmatprep.subr.mxu0 0.0
    %122 = vmatpush1.msra.mxu0 %v34
    %123 = vmatprep.subr.mxu0 0.0
    %124 = vmatpush1.msra.mxu0 %v35
    %125 = vmatprep.subr.mxu0 0.0
    %126 = vmatpush1.msra.mxu0 %v36
    %127 = vmatprep.subr.mxu0 0.0
    %128 = vmatpush1.msra.mxu0 %v37
    %129 = vmatprep.subr.mxu0 0.0
    %130 = vmatpush1.msra.mxu0 %v38
    %131 = vmatprep.subr.mxu0 0.0
    %132 = vmatpush1.msra.mxu0 %v39
    %133 = vmatprep.subr.mxu0 0.0
    %134 = vmatpush1.msra.mxu0 %v40
    %135 = vmatprep.subr.mxu0 0.0
    %136 = vmatpush1.msra.mxu0 %v41
    %137 = vmatprep.subr.mxu0 0.0
    %138 = vmatpush1.msra.mxu0 %v42
    %139 = vmatprep.subr.mxu0 0.0
    %140 = vmatpush1.msra.mxu0 %v43
    %141 = vmatprep.subr.mxu0 0.0
    %142 = vmatpush1.msra.mxu0 %v44
    %143 = vmatprep.subr.mxu0 0.0
    %144 = vmatpush1.msra.mxu0 %v45
    %145 = vmatprep.subr.mxu0 0.0
    %146 = vmatpush1.msra.mxu0 %v46
    %147 = vmatprep.subr.mxu0 0.0
    %148 = vmatpush1.msra.mxu0 %v47
    %149 = vmatprep.subr.mxu0 0.0
    %150 = vmatpush1.msra.mxu0 %v48
    %151 = vmatprep.subr.mxu0 0.0
    %152 = vmatpush1.msra.mxu0 %v49
    %153 = vmatprep.subr.mxu0 0.0
    %154 = vmatpush1.msra.mxu0 %v50
    %155 = vmatprep.subr.mxu0 0.0
    %156 = vmatpush1.msra.mxu0 %v51
    %157 = vmatprep.subr.mxu0 0.0
    %158 = vmatpush1.msra.mxu0 %v52
    %159 = vmatprep.subr.mxu0 0.0
    %160 = vmatpush1.msra.mxu0 %v53
    %161 = vmatprep.subr.mxu0 0.0
    %162 = vmatpush1.msra.mxu0 %v54
    %163 = vmatprep.subr.mxu0 0.0
    %164 = vmatpush1.msra.mxu0 %v55
    %165 = vmatprep.subr.mxu0 0.0
    %166 = vmatpush1.msra.mxu0 %v56
    %167 = vmatprep.subr.mxu0 0.0
    %168 = vmatpush1.msra.mxu0 %v57
    %169 = vmatprep.subr.mxu0 0.0
    %170 = vmatpush1.msra.mxu0 %v58
    %171 = vmatprep.subr.mxu0 0.0
    %172 = vmatpush1.msra.mxu0 %v59
    %173 = vmatprep.mubr.f32.mxu0 %v101
    %174 = vmatmul.mubr.f32.gmra.mrb[0].mxu0 %v93
    %v175 = vpop.f32.mrb[0].mxu0
    %v176 = vadd.f32 %v83, %v175
    %v177 = vpop.f32.mrb[0].mxu0
    %178 = vdwg.mxu0
    %179 = vmatprep.subr.mxu0 0.0
    %180 = vmatpush1.msra.mxu0 %v60
    %181 = vmatprep.subr.mxu0 0.0
    %182 = vmatpush1.msra.mxu0 %v61
    %183 = vmatprep.subr.mxu0 0.0
    %184 = vmatpush1.msra.mxu0 %v62
    %185 = vmatprep.subr.mxu0 0.0
    %186 = vmatpush1.msra.mxu0 %v63
    %187 = vmatprep.subr.mxu0 0.0
    %188 = vmatpush1.msra.mxu0 %v64
    %189 = vmatprep.subr.mxu0 0.0
    %190 = vmatpush1.msra.mxu0 %v65
    %191 = vmatprep.subr.mxu0 0.0
    %192 = vmatpush1.msra.mxu0 %v66
    %193 = vmatprep.subr.mxu0 0.0
    %194 = vmatpush1.msra.mxu0 %v67
    %195 = vmatprep.subr.mxu0 0.0
    %196 = vmatpush1.msra.mxu0 %v68
    %197 = vmatprep.subr.mxu0 0.0
    %198 = vmatpush1.msra.mxu0 %v69
    %199 = vmatprep.subr.mxu0 0.0
    %200 = vmatpush1.msra.mxu0 %v70
    %201 = vmatprep.subr.mxu0 0.0
    %202 = vmatpush1.msra.mxu0 %v71
    %203 = vmatprep.subr.mxu0 0.0
    %204 = vmatpush1.msra.mxu0 %v72
    %205 = vmatprep.subr.mxu0 0.0
    %206 = vmatpush1.msra.mxu0 %v73
    %207 = vmatprep.subr.mxu0 0.0
    %208 = vmatpush1.msra.mxu0 %v74
    %209 = vmatprep.subr.mxu0 0.0
    %210 = vmatpush1.msra.mxu0 %v75
    %211 = vmatprep.subr.mxu0 0.0
    %212 = vmatpush1.msra.mxu0 %v76
    %213 = vmatprep.subr.mxu0 0.0
    %214 = vmatpush1.msra.mxu0 %v77
    %215 = vmatprep.subr.mxu0 0.0
    %216 = vmatpush1.msra.mxu0 0.0
    %217 = vmatprep.subr.mxu0 0.0
    %218 = vmatpush1.msra.mxu0 0.0
    %219 = vmatprep.subr.mxu0 0.0
    %220 = vmatpush1.msra.mxu0 0.0
    %221 = vmatprep.subr.mxu0 0.0
    %222 = vmatpush1.msra.mxu0 0.0
    %223 = vmatprep.subr.mxu0 0.0
    %224 = vmatpush1.msra.mxu0 0.0
    %225 = vmatprep.subr.mxu0 0.0
    %226 = vmatpush1.msra.mxu0 0.0
    %227 = vmatprep.subr.mxu0 0.0
    %228 = vmatpush1.msra.mxu0 0.0
    %229 = vmatprep.subr.mxu0 0.0
    %230 = vmatpush1.msra.mxu0 0.0
    %231 = vmatprep.subr.mxu0 0.0
    %232 = vmatpush1.msra.mxu0 0.0
    %233 = vmatprep.subr.mxu0 0.0
    %234 = vmatpush1.msra.mxu0 0.0
    %235 = vmatprep.subr.mxu0 0.0
    %236 = vmatpush1.msra.mxu0 0.0
    %237 = vmatprep.subr.mxu0 0.0
    %238 = vmatpush1.msra.mxu0 0.0
    %239 = vmatprep.subr.mxu0 0.0
    %240 = vmatpush1.msra.mxu0 0.0
    %241 = vmatprep.subr.mxu0 0.0
    %242 = vmatpush1.msra.mxu0 0.0
    %243 = vmatprep.mubr.f32.mxu0 %v107
    %244 = vmatmul.mubr.f32.gmra.mrb[0].mxu0 %v100
    %v245 = vpop.f32.mrb[0].mxu0
    %v246 = vadd.f32 %v176, %v245
    %v247 = vpop.f32.mrb[0].mxu0
    %248 = vdwg.mxu0
    %v249 = vmax.f32 %v246, 0.0
    %v250 = vld [vmem:[%s3] sm:$0xff]
    %v251 = vld [vmem:[%s3 + $0x8] sm:$0xff]
    %v252 = vld [vmem:[%s3 + $0x10] sm:$0xff]
    %v253 = vld [vmem:[%s3 + $0x18] sm:$0xff]
    %v254 = vld [vmem:[%s3 + $0x20] sm:$0xff]
    %v255 = vld [vmem:[%s3 + $0x28] sm:$0xff]
    %v256 = vld [vmem:[%s3 + $0x30] sm:$0xff]
    %v257 = vld [vmem:[%s3 + $0x38] sm:$0xff]
    %v258 = vld [vmem:[%s3 + $0x40] sm:$0xff]
    %v259 = vld [vmem:[%s3 + $0x48] sm:$0xff]
    %v260 = vld [vmem:[%s3 + $0x50] sm:$0xff]
    %v261 = vld [vmem:[%s3 + $0x58] sm:$0xff]
    %v262 = vld [vmem:[%s3 + $0x60] sm:$0xff]
    %v263 = vld [vmem:[%s3 + $0x68] sm:$0xff]
    %v264 = vld [vmem:[%s3 + $0x70] sm:$0xff]
    %v265 = vld [vmem:[%s3 + $0x78] sm:$0xff]
    %v266 = vld [vmem:[%s4] sm:$0x1]
    %v268 = vlaneseq
    %v269 = vshrl.u32 %v268, 7
    %v270 = vsub.s32 0, %v269
    %v271 = vrot.slane %v266, %v270
    %273 = vmatprep.subr.mxu0 0.0
    %274 = vmatpush1.msra.mxu0 %v250
    %275 = vmatprep.subr.mxu0 0.0
    %276 = vmatpush1.msra.mxu0 %v251
    %277 = vmatprep.subr.mxu0 0.0
    %278 = vmatpush1.msra.mxu0 %v252
    %279 = vmatprep.subr.mxu0 0.0
    %280 = vmatpush1.msra.mxu0 %v253
    %281 = vmatprep.subr.mxu0 0.0
    %282 = vmatpush1.msra.mxu0 %v254
    %283 = vmatprep.subr.mxu0 0.0
    %284 = vmatpush1.msra.mxu0 %v255
    %285 = vmatprep.subr.mxu0 0.0
    %286 = vmatpush1.msra.mxu0 %v256
    %287 = vmatprep.subr.mxu0 0.0
    %288 = vmatpush1.msra.mxu0 %v257
    %289 = vmatprep.subr.mxu0 0.0
    %290 = vmatpush1.msra.mxu0 %v258
    %291 = vmatprep.subr.mxu0 0.0
    %292 = vmatpush1.msra.mxu0 %v259
    %293 = vmatprep.subr.mxu0 0.0
    %294 = vmatpush1.msra.mxu0 %v260
    %295 = vmatprep.subr.mxu0 0.0
    %296 = vmatpush1.msra.mxu0 %v261
    %297 = vmatprep.subr.mxu0 0.0
    %298 = vmatpush1.msra.mxu0 %v262
    %299 = vmatprep.subr.mxu0 0.0
    %300 = vmatpush1.msra.mxu0 %v263
    %301 = vmatprep.subr.mxu0 0.0
    %302 = vmatpush1.msra.mxu0 %v264
    %303 = vmatprep.subr.mxu0 0.0
    %304 = vmatpush1.msra.mxu0 %v265
    %305 = vmatprep.subr.mxu0 0.0
    %306 = vmatpush1.msra.mxu0 0.0
    %307 = vmatprep.subr.mxu0 0.0
    %308 = vmatpush1.msra.mxu0 0.0
    %309 = vmatprep.subr.mxu0 0.0
    %310 = vmatpush1.msra.mxu0 0.0
    %311 = vmatprep.subr.mxu0 0.0
    %312 = vmatpush1.msra.mxu0 0.0
    %313 = vmatprep.subr.mxu0 0.0
    %314 = vmatpush1.msra.mxu0 0.0
    %315 = vmatprep.subr.mxu0 0.0
    %316 = vmatpush1.msra.mxu0 0.0
    %317 = vmatprep.subr.mxu0 0.0
    %318 = vmatpush1.msra.mxu0 0.0
    %319 = vmatprep.subr.mxu0 0.0
    %320 = vmatpush1.msra.mxu0 0.0
    %321 = vmatprep.subr.mxu0 0.0
    %322 = vmatpush1.msra.mxu0 0.0
    %323 = vmatprep.subr.mxu0 0.0
    %324 = vmatpush1.msra.mxu0 0.0
    %325 = vmatprep.subr.mxu0 0.0
    %326 = vmatpush1.msra.mxu0 0.0
    %327 = vmatprep.subr.mxu0 0.0
    %328 = vmatpush1.msra.mxu0 0.0
    %329 = vmatprep.subr.mxu0 0.0
    %330 = vmatpush1.msra.mxu0 0.0
    %331 = vmatprep.subr.mxu0 0.0
    %332 = vmatpush1.msra.mxu0 0.0
    %333 = vmatprep.subr.mxu0 0.0
    %334 = vmatpush1.msra.mxu0 0.0
    %335 = vmatprep.subr.mxu0 0.0
    %336 = vmatpush1.msra.mxu0 0.0
    %337 = vmatprep.mubr.f32.mxu0 0.0
    %338 = vmatmul.mubr.f32.gmra.mrb[0].mxu0 %v249
    %v339 = vpop.f32.mrb[0].mxu0
    %v340 = vadd.f32 %v271, %v339
    %v341 = vpop.f32.mrb[0].mxu0
    %342 = vdwg.mxu0
    %v343 = vmax.f32 %v340, 0.0
    %v344 = vld [vmem:[%s5] sm:$0xff]
    %v345 = vld [vmem:[%s5 + $0x8] sm:$0xff]
    %v346 = vld [vmem:[%s5 + $0x10] sm:$0xff]
    %v347 = vld [vmem:[%s5 + $0x18] sm:$0xff]
    %v348 = vld [vmem:[%s5 + $0x20] sm:$0xff]
    %v349 = vld [vmem:[%s5 + $0x28] sm:$0xff]
    %v350 = vld [vmem:[%s5 + $0x30] sm:$0xff]
    %v351 = vld [vmem:[%s5 + $0x38] sm:$0xff]
    %v352 = vld [vmem:[%s5 + $0x40] sm:$0xff]
    %v353 = vld [vmem:[%s5 + $0x48] sm:$0xff]
    %v354 = vld [vmem:[%s5 + $0x50] sm:$0xff]
    %v355 = vld [vmem:[%s5 + $0x58] sm:$0xff]
    %v356 = vld [vmem:[%s5 + $0x60] sm:$0xff]
    %v357 = vld [vmem:[%s5 + $0x68] sm:$0xff]
    %v358 = vld [vmem:[%s5 + $0x70] sm:$0xff]
    %v359 = vld [vmem:[%s5 + $0x78] sm:$0xff]
    %v360 = vld [vmem:[%s6] sm:$0x1]
    %v362 = vlaneseq
    %v363 = vshrl.u32 %v362, 7
    %v364 = vsub.s32 0, %v363
    %v365 = vrot.slane %v360, %v364
    %367 = vmatprep.subr.mxu0 0.0
    %368 = vmatpush1.msra.mxu0 %v344
    %369 = vmatprep.subr.mxu0 0.0
    %370 = vmatpush1.msra.mxu0 %v345
    %371 = vmatprep.subr.mxu0 0.0
    %372 = vmatpush1.msra.mxu0 %v346
    %373 = vmatprep.subr.mxu0 0.0
    %374 = vmatpush1.msra.mxu0 %v347
    %375 = vmatprep.subr.mxu0 0.0
    %376 = vmatpush1.msra.mxu0 %v348
    %377 = vmatprep.subr.mxu0 0.0
    %378 = vmatpush1.msra.mxu0 %v349
    %379 = vmatprep.subr.mxu0 0.0
    %380 = vmatpush1.msra.mxu0 %v350
    %381 = vmatprep.subr.mxu0 0.0
    %382 = vmatpush1.msra.mxu0 %v351
    %383 = vmatprep.subr.mxu0 0.0
    %384 = vmatpush1.msra.mxu0 %v352
    %385 = vmatprep.subr.mxu0 0.0
    %386 = vmatpush1.msra.mxu0 %v353
    %387 = vmatprep.subr.mxu0 0.0
    %388 = vmatpush1.msra.mxu0 %v354
    %389 = vmatprep.subr.mxu0 0.0
    %390 = vmatpush1.msra.mxu0 %v355
    %391 = vmatprep.subr.mxu0 0.0
    %392 = vmatpush1.msra.mxu0 %v356
    %393 = vmatprep.subr.mxu0 0.0
    %394 = vmatpush1.msra.mxu0 %v357
    %395 = vmatprep.subr.mxu0 0.0
    %396 = vmatpush1.msra.mxu0 %v358
    %397 = vmatprep.subr.mxu0 0.0
    %398 = vmatpush1.msra.mxu0 %v359
    %399 = vmatprep.subr.mxu0 0.0
    %400 = vmatpush1.msra.mxu0 0.0
    %401 = vmatprep.subr.mxu0 0.0
    %402 = vmatpush1.msra.mxu0 0.0
    %403 = vmatprep.subr.mxu0 0.0
    %404 = vmatpush1.msra.mxu0 0.0
    %405 = vmatprep.subr.mxu0 0.0
    %406 = vmatpush1.msra.mxu0 0.0
    %407 = vmatprep.subr.mxu0 0.0
    %408 = vmatpush1.msra.mxu0 0.0
    %409 = vmatprep.subr.mxu0 0.0
    %410 = vmatpush1.msra.mxu0 0.0
    %411 = vmatprep.subr.mxu0 0.0
    %412 = vmatpush1.msra.mxu0 0.0
    %413 = vmatprep.subr.mxu0 0.0
    %414 = vmatpush1.msra.mxu0 0.0
    %415 = vmatprep.subr.mxu0 0.0
    %416 = vmatpush1.msra.mxu0 0.0
    %417 = vmatprep.subr.mxu0 0.0
    %418 = vmatpush1.msra.mxu0 0.0
    %419 = vmatprep.subr.mxu0 0.0
    %420 = vmatpush1.msra.mxu0 0.0
    %421 = vmatprep.subr.mxu0 0.0
    %422 = vmatpush1.msra.mxu0 0.0
    %423 = vmatprep.subr.mxu0 0.0
    %424 = vmatpush1.msra.mxu0 0.0
    %425 = vmatprep.subr.mxu0 0.0
    %426 = vmatpush1.msra.mxu0 0.0
    %427 = vmatprep.subr.mxu0 0.0
    %428 = vmatpush1.msra.mxu0 0.0
    %429 = vmatprep.subr.mxu0 0.0
    %430 = vmatpush1.msra.mxu0 0.0
    %431 = vmatprep.mubr.f32.mxu0 0.0
    %432 = vmatmul.mubr.f32.gmra.mrb[0].mxu0 %v343
    %v433 = vpop.f32.mrb[0].mxu0
    %v434 = vadd.f32 %v365, %v433
    %v435 = vpop.f32.mrb[0].mxu0
    %436 = vdwg.mxu0
    %437 = vst [vmem:[#allocation2] sm:$0x3] %v434
    // Predicated region
    $region30: #{net_forward.5} parent=1 // pred_check
      _
    $region31: #{net_forward.5} parent=1 // pred_check_branch
      %439 = sbr.rel (0) target = $region33
    $region32: #{net_forward.5} parent=1 // pred_region
      %s441 = ssub.s32 32, 32
      %442 = vsyncadd [#allocation3], %s441
      %s444 = sshll.u32 [#allocation2], 4
      %s445 = int_to_ptr.vmem [resolvable:$true] %s444
      %447 = dma.vmem_to_hbm [thread:$0]  %s445, 32, %s7, [#allocation3]
    $region33: #{net_forward.5} parent=1 // pred_fallthru
      _
    // Predicated region
    $region34: #{net_forward.5} parent=1 // pred_check
      _
    $region35: #{net_forward.5} parent=1 // pred_check_branch
      %449 = sbr.rel (0) target = $region37
    $region36: #{net_forward.5} parent=1 // pred_region
      %450 = dma.done [#allocation3], 32
    $region37: #{net_forward.5} parent=1 // pred_fallthru
      _
    %451 = vsyncpa [#allocation3], 1

</llo_original>
